<compile_context>
chip_gen: v6e
topology: v6e:2x2x1
jax: 0.10.0
libtpu: 0.0.40
codegen_flags: <defaults>
</compile_context>

<pallas_src>
import functools

import jax
import jax.numpy as jnp
from jax import lax
from jax.experimental import pallas as pl
from jax.experimental.pallas import tpu as pltpu


# ----------------------------- kernel bodies ------------------------------ #

def _mlp_logits(xT, w1, b1, w2, b2, w3, b3):
    """MLP on feature-major activations.

    xT: (nb_inputs, tileB).  Weights are PyTorch nn.Linear layout (out, in) and feed
    the MXU directly as the LHS of a standard matmul (contract W's `in` dim with X's
    feature dim) -- no transposes, no RHS-lane-dim contraction.  Biases are (out, 1)
    float32 columns broadcast over the batch (lane) axis.  f32 accumulation.
    """
    dn = (((1,), (0,)), ((), ()))          # W (out,in) @ X (in,B) -> (out,B)
    cdt = w1.dtype                         # f32 by default; bf16 only if caller opts in
    h = lax.dot_general(w1, xT.astype(cdt), dn, preferred_element_type=jnp.float32)
    h = jnp.maximum(h + b1, 0.0)
    h = lax.dot_general(w2, h.astype(cdt), dn, preferred_element_type=jnp.float32)
    h = jnp.maximum(h + b2, 0.0)
    logits = lax.dot_general(w3, h.astype(cdt), dn, preferred_element_type=jnp.float32)
    return logits + b3


def _softmax_over_batch(logits):
    """Softmax over the batch axis (last axis in the feature-major layout).

    Matches nn.Softmax(dim=0) applied to the caller-facing (B, nb_outputs) output.
    Exact normalization (no approx reciprocal) so each column sums to 1.
    """
    m = jnp.max(logits, axis=-1, keepdims=True)
    e = jnp.exp(logits - m)
    return e / jnp.sum(e, axis=-1, keepdims=True)


def _fused_policy_kernel(x_ref, w1_ref, b1_ref, w2_ref, b2_ref, w3_ref, b3_ref, o_ref):
    """Whole batch resident in VMEM: one launch does MLP + softmax(dim=0)."""
    logits = _mlp_logits(x_ref[...], w1_ref[...], b1_ref[...], w2_ref[...],
                         b2_ref[...], w3_ref[...], b3_ref[...])
    o_ref[...] = _softmax_over_batch(logits).astype(o_ref.dtype)


def _tiled_policy_kernel(x_ref, w1_ref, b1_ref, w2_ref, b2_ref, w3_ref, b3_ref, o_ref,
                         *, tile_b, valid_b):
    """Huge-B fallback, still a single pallas_call.

    Grid streams (nb_inputs, tile_b) input tiles; weights and the full
    (nb_outputs, B_pad) output block stay VMEM-resident across all grid steps
    (same block index every step).  The softmax over the batch couples every tile,
    so it runs once on the resident logits in the last grid step.
    """
    i = pl.program_id(0)
    logits = _mlp_logits(x_ref[...], w1_ref[...], b1_ref[...], w2_ref[...],
                         b2_ref[...], w3_ref[...], b3_ref[...])
    start = pl.multiple_of(i * tile_b, tile_b)
    o_ref[:, pl.ds(start, tile_b)] = logits.astype(o_ref.dtype)

    @pl.when(i == pl.num_programs(0) - 1)
    def _finalize():
        full = o_ref[...].astype(jnp.float32)            # resident raw logits
        if valid_b < full.shape[-1]:
            # Padded batch columns (wrapper zero-pads B up to a tile multiple) must
            # never contribute to the dim=0 softmax max/sum -> mask to -inf.
            cols = lax.broadcasted_iota(jnp.int32, full.shape, 1)
            full = jnp.where(cols < valid_b, full, -jnp.inf)
        o_ref[...] = _softmax_over_batch(full).astype(o_ref.dtype)


# ------------------------------- wrapper ----------------------------------- #

def _fused_row_budget(nb_inputs, nb_hidden, nb_outputs):
    """Max batch rows that comfortably fit the fused (everything-resident) path."""
    try:
        vmem = pltpu.get_tpu_info().vmem_capacity_bytes   # 64 MiB/TC on v7x, 128 MiB on v5e/v6e
    except Exception:                                     # pragma: no cover - be robust
        vmem = 64 << 20
    budget = min(vmem // 8, 8 << 20)                      # stay well under every scoped default
    # f32 activations per batch row (x, h1, h2, logits/exp/out) with ~2x slack.
    per_row = 8 * (nb_inputs + 2 * nb_hidden + 3 * nb_outputs)
    return max(128, (budget // per_row) // 128 * 128)     # ~10k+ rows at 16/32/8 widths


def policy_network_forward(x, params, *, max_fused_b=None, tile_b=512):
    """Forward pass of PolicyNetwork.

    x: (B, nb_inputs).  params: PyTorch nn.Linear layout W (out, in), b (out,).
    Returns (B, nb_outputs) with softmax over dim=0 (the batch), like the module.

    # TODO(synk): the PyTorch module also accepts a 1-D state (softmax over the
    # action dim); this wrapper implements the batched 2-D case only.
    """
    B, nb_inputs = x.shape
    nb_hidden = params["w1"].shape[0]
    nb_outputs = params["w3"].shape[0]

    w1, w2, w3 = params["w1"], params["w2"], params["w3"]
    # Biases stay f32 (even for bf16 weights) and become (out, 1) columns so they
    # broadcast across the batch (lane) axis -- metadata-only reshape.
    b1 = params["b1"].reshape(-1, 1).astype(jnp.float32)
    b2 = params["b2"].reshape(-1, 1).astype(jnp.float32)
    b3 = params["b3"].reshape(-1, 1).astype(jnp.float32)
    weight_args = (w1, b1, w2, b2, w3, b3)

    # Feature-major layout: batch on the lane axis (lane-dense stores, batch is the
    # large MXU N dim).  The transposes live in the XLA wrapper, not in the kernel.
    xT = x.T                                              # (nb_inputs, B)

    # Full-array block, same block index every grid step -> VMEM resident.
    resident = lambda a: pl.BlockSpec(a.shape, lambda *_: (0,) * a.ndim)

    if max_fused_b is None:
        max_fused_b = _fused_row_budget(nb_inputs, nb_hidden, nb_outputs)

    if B <= max_fused_b:
        # One fused launch: MLP + softmax(dim=0), everything resident in VMEM.
        outT = pl.pallas_call(
            _fused_policy_kernel,
            out_shape=jax.ShapeDtypeStruct((nb_outputs, B), jnp.float32),
            in_specs=[resident(xT)] + [resident(a) for a in weight_args],
            out_specs=pl.BlockSpec((nb_outputs, B), lambda *_: (0, 0)),
        )(xT, *weight_args)
        return outT.T

    # Huge-B fallback: single launch, grid over batch tiles, logits block resident,
    # softmax fused into the last grid step.  Grid axis is a reduction over the
    # resident output -> "arbitrary" (no claim of a megacore win at these sizes).
    assert tile_b % 128 == 0, "tile_b must be a multiple of 128 (lane width)"
    nt = pl.cdiv(B, tile_b)
    B_pad = nt * tile_b
    if B_pad != B:
        xT = jnp.pad(xT, ((0, 0), (0, B_pad - B)))        # padded cols masked in-kernel

    kernel = functools.partial(_tiled_policy_kernel, tile_b=tile_b, valid_b=B)
    outT = pl.pallas_call(
        kernel,
        out_shape=jax.ShapeDtypeStruct((nb_outputs, B_pad), jnp.float32),
        grid=(nt,),
        in_specs=[pl.BlockSpec((nb_inputs, tile_b), lambda i: (0, i))]
        + [resident(a) for a in weight_args],
        out_specs=pl.BlockSpec((nb_outputs, B_pad), lambda i: (0, 0)),
        compiler_params=pltpu.CompilerParams(dimension_semantics=("arbitrary",)),
    )(xT, *weight_args)
    return outT[:, :B].T


# --------------------------- params / reference ---------------------------- #

def init_params(key, nb_inputs, nb_hidden, nb_outputs):
    """Deterministic synthetic params in PyTorch nn.Linear layout: W (out, in), b (out,)."""
    ks = jax.random.split(key, 6)

    def linear(kw, kb, fan_in, fan_out):
        bound = 1.0 / jnp.sqrt(fan_in)
        w = jax.random.uniform(kw, (fan_out, fan_in), jnp.float32, -bound, bound)
        b = jax.random.uniform(kb, (fan_out,), jnp.float32, -bound, bound)
        return w, b

    w1, b1 = linear(ks[0], ks[1], nb_inputs, nb_hidden)
    w2, b2 = linear(ks[2], ks[3], nb_hidden, nb_hidden)
    w3, b3 = linear(ks[4], ks[5], nb_hidden, nb_outputs)
    return {"w1": w1, "b1": b1, "w2": w2, "b2": b2, "w3": w3, "b3": b3}


def reference_forward(x, p):
    h1 = jnp.maximum(x @ p["w1"].T + p["b1"], 0.0)
    h2 = jnp.maximum(h1 @ p["w2"].T + p["b2"], 0.0)
    logits = h2 @ p["w3"].T + p["b3"]
    return jax.nn.softmax(logits, axis=0)


# ---------------------------------- main ----------------------------------- #

if __name__ == "__main__":
    # Full-f32 matmuls for both the kernel and the XLA reference so the comparison
    # is not dominated by default bf16-pass rounding (perf-irrelevant at these sizes).
    jax.config.update("jax_default_matmul_precision", "highest")

    nb_inputs, nb_hidden, nb_outputs = 16, 32, 8

    key = jax.random.PRNGKey(0)
    kp, kx1, kx2, kx3 = jax.random.split(key, 4)
    params = init_params(kp, nb_inputs, nb_hidden, nb_outputs)

    fwd = jax.jit(policy_network_forward, static_argnames=("max_fused_b", "tile_b"))

    # 1) Small batch (typical per-step RL call): fused single-launch path.
    x_small = jax.random.normal(kx1, (2, nb_inputs), jnp.float32)
    out_small = jax.block_until_ready(fwd(x_small, params))
    ref_small = reference_forward(x_small, params)
    assert out_small.shape == (2, nb_outputs)
    assert jnp.allclose(out_small, ref_small, atol=1e-3, rtol=1e-2), "small-batch mismatch"

    # 2) Stacked batch B=512: still the single fused launch (threshold is now derived
    #    from a VMEM byte budget, ~10k+ rows at these widths).
    x_big = jax.random.normal(kx2, (512, nb_inputs), jnp.float32)
    out_big = jax.block_until_ready(fwd(x_big, params))
    ref_big = reference_forward(x_big, params)
    assert out_big.shape == (512, nb_outputs)
    assert jnp.allclose(out_big, ref_big, atol=1e-3, rtol=1e-2), "fused-batch mismatch"

    # 3) Huge-B fallback, forced here with a tiny threshold and a non-tile-multiple B
    #    to exercise the padded-column masking inside the fused softmax finalize.
    x_odd = jax.random.normal(kx3, (500, nb_inputs), jnp.float32)
    out_odd = jax.block_until_ready(fwd(x_odd, params, max_fused_b=128, tile_b=128))
    ref_odd = reference_forward(x_odd, params)
    assert out_odd.shape == (500, nb_outputs)
    assert jnp.allclose(out_odd, ref_odd, atol=1e-3, rtol=1e-2), "tiled-batch mismatch"

    # 4) Optional bf16 weights (f32 MXU accumulation); biases stay f32 per review.
    params_bf16 = dict(params)
    for k in ("w1", "w2", "w3"):
        params_bf16[k] = params[k].astype(jnp.bfloat16)
    out_bf16 = jax.block_until_ready(fwd(x_big, params_bf16))
    assert jnp.allclose(out_bf16, ref_big, atol=5e-2, rtol=5e-2), "bf16 mismatch"

    print("KERNEL_OK")
</pallas_src>

<mosaic_0001>
module attributes {stable_mosaic.version = 11 : i64} {
  func.func @_fused_policy_kernel(%arg0: memref<16x2xf32, #tpu.memory_space<vmem>>, %arg1: memref<32x16xf32, #tpu.memory_space<vmem>>, %arg2: memref<32x1xf32, #tpu.memory_space<vmem>>, %arg3: memref<32x32xf32, #tpu.memory_space<vmem>>, %arg4: memref<32x1xf32, #tpu.memory_space<vmem>>, %arg5: memref<8x32xf32, #tpu.memory_space<vmem>>, %arg6: memref<8x1xf32, #tpu.memory_space<vmem>>, %arg7: memref<8x2xf32, #tpu.memory_space<vmem>>) attributes {dimension_semantics = [], scalar_prefetch = 0 : i64, scratch_operands = 0 : i64, tpu.core_type = #tpu.core_type<tc>} {
    %c0 = arith.constant 0 : index
    %c0_0 = arith.constant 0 : index
    %0 = vector.load %arg0[%c0, %c0_0] : memref<16x2xf32, #tpu.memory_space<vmem>>, vector<16x2xf32>
    %c0_1 = arith.constant 0 : index
    %c0_2 = arith.constant 0 : index
    %1 = vector.load %arg1[%c0_1, %c0_2] : memref<32x16xf32, #tpu.memory_space<vmem>>, vector<32x16xf32>
    %c0_3 = arith.constant 0 : index
    %c0_4 = arith.constant 0 : index
    %2 = vector.load %arg2[%c0_3, %c0_4] : memref<32x1xf32, #tpu.memory_space<vmem>>, vector<32x1xf32>
    %c0_5 = arith.constant 0 : index
    %c0_6 = arith.constant 0 : index
    %3 = vector.load %arg3[%c0_5, %c0_6] : memref<32x32xf32, #tpu.memory_space<vmem>>, vector<32x32xf32>
    %c0_7 = arith.constant 0 : index
    %c0_8 = arith.constant 0 : index
    %4 = vector.load %arg4[%c0_7, %c0_8] : memref<32x1xf32, #tpu.memory_space<vmem>>, vector<32x1xf32>
    %c0_9 = arith.constant 0 : index
    %c0_10 = arith.constant 0 : index
    %5 = vector.load %arg5[%c0_9, %c0_10] : memref<8x32xf32, #tpu.memory_space<vmem>>, vector<8x32xf32>
    %c0_11 = arith.constant 0 : index
    %c0_12 = arith.constant 0 : index
    %6 = vector.load %arg6[%c0_11, %c0_12] : memref<8x1xf32, #tpu.memory_space<vmem>>, vector<8x1xf32>
    %cst = arith.constant dense<0.000000e+00> : vector<32x2xf32>
    %7 = tpu.matmul %1, %0, %cst {dimension_numbers = #tpu.dot_dimension_numbers<[1], [0], [0], [1], [0, 0, 1, 1], [], []>, precision = #tpu.contract_precision<fp32>} : vector<32x16xf32>, vector<16x2xf32>, vector<32x2xf32> -> vector<32x2xf32>
    %8 = vector.broadcast %2 : vector<32x1xf32> to vector<32x2xf32>
    %9 = arith.addf %7, %8 : vector<32x2xf32>
    %cst_13 = arith.constant 0.000000e+00 : f32
    %10 = vector.broadcast %cst_13 : f32 to vector<32x2xf32>
    %11 = arith.maximumf %9, %10 : vector<32x2xf32>
    %cst_14 = arith.constant dense<0.000000e+00> : vector<32x2xf32>
    %12 = tpu.matmul %3, %11, %cst_14 {dimension_numbers = #tpu.dot_dimension_numbers<[1], [0], [0], [1], [0, 0, 1, 1], [], []>, precision = #tpu.contract_precision<fp32>} : vector<32x32xf32>, vector<32x2xf32>, vector<32x2xf32> -> vector<32x2xf32>
    %13 = vector.broadcast %4 : vector<32x1xf32> to vector<32x2xf32>
    %14 = arith.addf %12, %13 : vector<32x2xf32>
    %cst_15 = arith.constant 0.000000e+00 : f32
    %15 = vector.broadcast %cst_15 : f32 to vector<32x2xf32>
    %16 = arith.maximumf %14, %15 : vector<32x2xf32>
    %cst_16 = arith.constant dense<0.000000e+00> : vector<8x2xf32>
    %17 = tpu.matmul %5, %16, %cst_16 {dimension_numbers = #tpu.dot_dimension_numbers<[1], [0], [0], [1], [0, 0, 1, 1], [], []>, precision = #tpu.contract_precision<fp32>} : vector<8x32xf32>, vector<32x2xf32>, vector<8x2xf32> -> vector<8x2xf32>
    %18 = vector.broadcast %6 : vector<8x1xf32> to vector<8x2xf32>
    %19 = arith.addf %17, %18 : vector<8x2xf32>
    %cst_17 = arith.constant dense<0xFF800000> : vector<8xf32>
    %20 = vector.multi_reduction <maximumf>, %19, %cst_17 [1] : vector<8x2xf32> to vector<8xf32>
    %21 = vector.shape_cast %20 : vector<8xf32> to vector<8x1xf32>
    %22 = vector.broadcast %21 : vector<8x1xf32> to vector<8x2xf32>
    %23 = arith.subf %19, %22 : vector<8x2xf32>
    %24 = math.exp %23 : vector<8x2xf32>
    %cst_18 = arith.constant dense<0.000000e+00> : vector<8xf32>
    %25 = vector.multi_reduction <add>, %24, %cst_18 [1] : vector<8x2xf32> to vector<8xf32>
    %26 = vector.shape_cast %25 : vector<8xf32> to vector<8x1xf32>
    %27 = vector.broadcast %26 : vector<8x1xf32> to vector<8x2xf32>
    %28 = arith.divf %24, %27 : vector<8x2xf32>
    %c0_19 = arith.constant 0 : index
    %c0_20 = arith.constant 0 : index
    %29 = vector.load %arg7[%c0_19, %c0_20] : memref<8x2xf32, #tpu.memory_space<vmem>>, vector<8x2xf32>
    tpu.vector_store %arg7[%c0_19, %c0_20], %28 {strides = array<i32>} : memref<8x2xf32, #tpu.memory_space<vmem>>, vector<8x2xf32>,
    return
  }
}

</mosaic_0001>

<llo_original>
// kernel: policy_network_forward.1
$region0: #{policy_network_forward.1}
  #allocation0 [shape = 'u32[]', space=smem, size = 0x4, offset = 0x4, fixed_abs, tag = 'smem constant byte address 0x4 - core index']
  #allocation1 [shape = 'u32[144,128]{1,0:T(1,128)}', space=vmem, size = 0x12000, scoped, tag = 'internal scratch']
  %s0 = inlined_call_operand.vmem [shape: f32[16,2], index: 0, kind: input, shape index: {}]
  %s1 = inlined_call_operand.vmem [shape: f32[32,16], index: 1, kind: input, shape index: {}]
  %s2 = inlined_call_operand.vmem [shape: f32[32,1], index: 2, kind: input, shape index: {}]
  %s3 = inlined_call_operand.vmem [shape: f32[32,32], index: 3, kind: input, shape index: {}]
  %s4 = inlined_call_operand.vmem [shape: f32[32,1], index: 4, kind: input, shape index: {}]
  %s5 = inlined_call_operand.vmem [shape: f32[8,32], index: 5, kind: input, shape index: {}]
  %s6 = inlined_call_operand.vmem [shape: f32[8,1], index: 6, kind: input, shape index: {}]
  %s7 = inlined_call_operand.vmem [shape: f32[8,2], index: 7, kind: output, shape index: {}]
  %s8 = sld [smem:[#allocation0]]
  $region38: #{policy_network_forward.1} parent=0
    _
  %s10 = ssub.s32 1, %s8
  %s11 = scalar_select 0, %s10, %s8
  // Predicated region
  $region2: #{policy_network_forward.1} parent=0 // pred_check
    _
  $region3: #{policy_network_forward.1} parent=0 // pred_check_branch
    %13 = sbr.rel (0) target = $region5
  $region4: #{policy_network_forward.1} parent=0 // pred_region
    _
  $region5: #{policy_network_forward.1} parent=0 // pred_fallthru
    _
  // Predicated region
  $region6: #{policy_network_forward.1} parent=0 // pred_check
    _
  $region7: #{policy_network_forward.1} parent=0 // pred_check_branch
    %15 = sbr.rel (0) target = $region9
  $region8: #{policy_network_forward.1} parent=0 // pred_region
    _
  $region9: #{policy_network_forward.1} parent=0 // pred_fallthru
    _
  // Predicated region
  $region10: #{policy_network_forward.1} parent=0 // pred_check
    _
  $region11: #{policy_network_forward.1} parent=0 // pred_check_branch
    %17 = sbr.rel (0) target = $region13
  $region12: #{policy_network_forward.1} parent=0 // pred_region
    _
  $region13: #{policy_network_forward.1} parent=0 // pred_fallthru
    _
  // Predicated region
  $region14: #{policy_network_forward.1} parent=0 // pred_check
    _
  $region15: #{policy_network_forward.1} parent=0 // pred_check_branch
    %19 = sbr.rel (0) target = $region17
  $region16: #{policy_network_forward.1} parent=0 // pred_region
    _
  $region17: #{policy_network_forward.1} parent=0 // pred_fallthru
    _
  // Predicated region
  $region18: #{policy_network_forward.1} parent=0 // pred_check
    _
  $region19: #{policy_network_forward.1} parent=0 // pred_check_branch
    %21 = sbr.rel (0) target = $region21
  $region20: #{policy_network_forward.1} parent=0 // pred_region
    _
  $region21: #{policy_network_forward.1} parent=0 // pred_fallthru
    _
  // Predicated region
  $region22: #{policy_network_forward.1} parent=0 // pred_check
    _
  $region23: #{policy_network_forward.1} parent=0 // pred_check_branch
    %23 = sbr.rel (0) target = $region25
  $region24: #{policy_network_forward.1} parent=0 // pred_region
    _
  $region25: #{policy_network_forward.1} parent=0 // pred_fallthru
    _
  // Predicated region
  $region26: #{policy_network_forward.1} parent=0 // pred_check
    _
  $region27: #{policy_network_forward.1} parent=0 // pred_check_branch
    %25 = sbr.rel (0) target = $region29
  $region28: #{policy_network_forward.1} parent=0 // pred_region
    _
  $region29: #{policy_network_forward.1} parent=0 // pred_fallthru
    _
  %v26 = vld [vmem:[%s0] sm:$0xff]
  %v27 = vld [vmem:[%s0 + $0x8] sm:$0xff]
  %v28 = vld [vmem:[%s1] sm:$0xff]
  %v29 = vld [vmem:[%s1 + $0x8] sm:$0xff]
  %v30 = vld [vmem:[%s1 + $0x10] sm:$0xff]
  %v31 = vld [vmem:[%s1 + $0x18] sm:$0xff]
  %v32 = vld [vmem:[%s2] sm:$0xff]
  %v33 = vld [vmem:[%s2 + $0x8] sm:$0xff]
  %v34 = vld [vmem:[%s2 + $0x10] sm:$0xff]
  %v35 = vld [vmem:[%s2 + $0x18] sm:$0xff]
  %v36 = vld [vmem:[%s3] sm:$0xff]
  %v37 = vld [vmem:[%s3 + $0x8] sm:$0xff]
  %v38 = vld [vmem:[%s3 + $0x10] sm:$0xff]
  %v39 = vld [vmem:[%s3 + $0x18] sm:$0xff]
  %v40 = vld [vmem:[%s4] sm:$0xff]
  %v41 = vld [vmem:[%s4 + $0x8] sm:$0xff]
  %v42 = vld [vmem:[%s4 + $0x10] sm:$0xff]
  %v43 = vld [vmem:[%s4 + $0x18] sm:$0xff]
  %v44 = vld [vmem:[%s5] sm:$0xff]
  %v45 = vld [vmem:[%s6] sm:$0xff]
  %47 = vset.pattern.permute.xlu0 0
  %48 = vperm.xlu0 %47, %v32
  %v49 = vpop.permute.xlu0 %48
  %52 = vset.pattern.permute.xlu0 0
  %53 = vperm.xlu0 %52, %v33
  %v54 = vpop.permute.xlu0 %53
  %57 = vset.pattern.permute.xlu0 0
  %58 = vperm.xlu0 %57, %v34
  %v59 = vpop.permute.xlu0 %58
  %62 = vset.pattern.permute.xlu0 0
  %63 = vperm.xlu0 %62, %v35
  %v64 = vpop.permute.xlu0 %63
  %vm66 = vcmask 130048
  %v68 = vsel %vm66, %v28, 0
  %v71 = vsel %vm66, %v29, 0
  %v74 = vsel %vm66, %v30, 0
  %v77 = vsel %vm66, %v31, 0
  %79 = vmatprep.subr.mxu0 0.0
  %80 = vmatpush1.msra.mxu0 0.0
  %81 = vmatprep.subr.mxu0 0.0
  %82 = vmatpush1.msra.mxu0 0.0
  %83 = vmatprep.subr.mxu0 0.0
  %84 = vmatpush1.msra.mxu0 0.0
  %85 = vmatprep.subr.mxu0 0.0
  %86 = vmatpush1.msra.mxu0 0.0
  %87 = vmatprep.subr.mxu0 0.0
  %88 = vmatpush1.msra.mxu0 0.0
  %89 = vmatprep.subr.mxu0 0.0
  %90 = vmatpush1.msra.mxu0 0.0
  %91 = vmatprep.subr.mxu0 0.0
  %92 = vmatpush1.msra.mxu0 0.0
  %93 = vmatprep.subr.mxu0 0.0
  %94 = vmatpush1.msra.mxu0 0.0
  %95 = vmatprep.subr.mxu0 0.0
  %96 = vmatpush1.msra.mxu0 0.0
  %97 = vmatprep.subr.mxu0 0.0
  %98 = vmatpush1.msra.mxu0 0.0
  %99 = vmatprep.subr.mxu0 0.0
  %100 = vmatpush1.msra.mxu0 0.0
  %101 = vmatprep.subr.mxu0 0.0
  %102 = vmatpush1.msra.mxu0 0.0
  %103 = vmatprep.subr.mxu0 0.0
  %104 = vmatpush1.msra.mxu0 0.0
  %105 = vmatprep.subr.mxu0 0.0
  %106 = vmatpush1.msra.mxu0 0.0
  %107 = vmatprep.subr.mxu0 0.0
  %v108 = vand.u32 %v27, 4294901760
  %109 = vmatpush1.msra.mxu0 %v108
  %110 = vmatprep.subr.mxu0 0.0
  %v111 = vand.u32 %v26, 4294901760
  %112 = vmatpush1.msra.mxu0 %v111
  %113 = vmatprep.subr.mxu0 0.0
  %114 = vmatpush2.msra.mxu0 0.0
  %115 = vmatprep.subr.mxu0 0.0
  %116 = vmatpush2.msra.mxu0 0.0
  %117 = vmatprep.subr.mxu0 0.0
  %118 = vmatpush2.msra.mxu0 0.0
  %119 = vmatprep.subr.mxu0 0.0
  %120 = vmatpush2.msra.mxu0 0.0
  %121 = vmatprep.subr.mxu0 0.0
  %122 = vmatpush2.msra.mxu0 0.0
  %123 = vmatprep.subr.mxu0 0.0
  %124 = vmatpush2.msra.mxu0 0.0
  %125 = vmatprep.subr.mxu0 0.0
  %126 = vmatpush2.msra.mxu0 0.0
  %127 = vmatprep.subr.mxu0 0.0
  %128 = vmatpush2.msra.mxu0 0.0
  %129 = vmatprep.subr.mxu0 0.0
  %130 = vmatpush2.msra.mxu0 0.0
  %131 = vmatprep.subr.mxu0 0.0
  %132 = vmatpush2.msra.mxu0 0.0
  %133 = vmatprep.subr.mxu0 0.0
  %134 = vmatpush2.msra.mxu0 0.0
  %135 = vmatprep.subr.mxu0 0.0
  %136 = vmatpush2.msra.mxu0 0.0
  %137 = vmatprep.subr.mxu0 0.0
  %138 = vmatpush2.msra.mxu0 0.0
  %139 = vmatprep.subr.mxu0 0.0
  %140 = vmatpush2.msra.mxu0 0.0
  %141 = vmatprep.subr.mxu0 0.0
  %142 = vmatpush2.msra.mxu0 0.0
  %143 = vmatprep.subr.mxu0 0.0
  %144 = vmatpush2.msra.mxu0 0.0
  %145 = vmatprep.mubr.f32.mxu0 0.0
  %v146 = vand.u32 %v68, 4294901760
  %v147 = vsub.f32 %v68, %v146
  %v148 = vand.u32 %v147, 4294901760
  %v149 = vsub.f32 %v147, %v148
  %v150 = vand.u32 %v149, 4294901760
  %151 = vmatmul.mubr.f32.gmra.mxu0 %v150
  %v152 = vpop.f32.mrf.mxu0
  %v153 = vadd.f32 %v49, %v152
  %v154 = vpop.f32.mrf.mxu0
  %155 = vmatprep.mubr.f32.mxu0 0.0
  %v156 = vand.u32 %v71, 4294901760
  %v157 = vsub.f32 %v71, %v156
  %v158 = vand.u32 %v157, 4294901760
  %v159 = vsub.f32 %v157, %v158
  %v160 = vand.u32 %v159, 4294901760
  %161 = vmatmul.mubr.f32.gmra.mxu0 %v160
  %v162 = vpop.f32.mrf.mxu0
  %v163 = vadd.f32 %v54, %v162
  %v164 = vpop.f32.mrf.mxu0
  %165 = vmatprep.mubr.f32.mxu0 0.0
  %v166 = vand.u32 %v74, 4294901760
  %v167 = vsub.f32 %v74, %v166
  %v168 = vand.u32 %v167, 4294901760
  %v169 = vsub.f32 %v167, %v168
  %v170 = vand.u32 %v169, 4294901760
  %171 = vmatmul.mubr.f32.gmra.mxu0 %v170
  %v172 = vpop.f32.mrf.mxu0
  %v173 = vadd.f32 %v59, %v172
  %v174 = vpop.f32.mrf.mxu0
  %175 = vmatprep.mubr.f32.mxu0 0.0
  %v176 = vand.u32 %v77, 4294901760
  %v177 = vsub.f32 %v77, %v176
  %v178 = vand.u32 %v177, 4294901760
  %v179 = vsub.f32 %v177, %v178
  %v180 = vand.u32 %v179, 4294901760
  %181 = vmatmul.mubr.f32.gmra.mxu0 %v180
  %v182 = vpop.f32.mrf.mxu0
  %v183 = vadd.f32 %v64, %v182
  %v184 = vpop.f32.mrf.mxu0
  %185 = vdwg.mxu0
  %186 = vmatprep.subr.mxu0 0.0
  %187 = vmatpush1.msra.mxu0 0.0
  %188 = vmatprep.subr.mxu0 0.0
  %189 = vmatpush1.msra.mxu0 0.0
  %190 = vmatprep.subr.mxu0 0.0
  %191 = vmatpush1.msra.mxu0 0.0
  %192 = vmatprep.subr.mxu0 0.0
  %193 = vmatpush1.msra.mxu0 0.0
  %194 = vmatprep.subr.mxu0 0.0
  %195 = vmatpush1.msra.mxu0 0.0
  %196 = vmatprep.subr.mxu0 0.0
  %197 = vmatpush1.msra.mxu0 0.0
  %198 = vmatprep.subr.mxu0 0.0
  %199 = vmatpush1.msra.mxu0 0.0
  %200 = vmatprep.subr.mxu0 0.0
  %201 = vmatpush1.msra.mxu0 0.0
  %202 = vmatprep.subr.mxu0 0.0
  %203 = vmatpush1.msra.mxu0 0.0
  %204 = vmatprep.subr.mxu0 0.0
  %205 = vmatpush1.msra.mxu0 0.0
  %206 = vmatprep.subr.mxu0 0.0
  %207 = vmatpush1.msra.mxu0 0.0
  %208 = vmatprep.subr.mxu0 0.0
  %209 = vmatpush1.msra.mxu0 0.0
  %210 = vmatprep.subr.mxu0 0.0
  %211 = vmatpush1.msra.mxu0 0.0
  %212 = vmatprep.subr.mxu0 0.0
  %213 = vmatpush1.msra.mxu0 0.0
  %214 = vmatprep.subr.mxu0 0.0
  %v215 = vand.u32 %v27, 4294901760
  %v216 = vsub.f32 %v27, %v215
  %v217 = vand.u32 %v216, 4294901760
  %v218 = vsub.f32 %v216, %v217
  %v219 = vand.u32 %v218, 4294901760
  %220 = vmatpush1.msra.mxu0 %v219
  %221 = vmatprep.subr.mxu0 0.0
  %v222 = vand.u32 %v26, 4294901760
  %v223 = vsub.f32 %v26, %v222
  %v224 = vand.u32 %v223, 4294901760
  %v225 = vsub.f32 %v223, %v224
  %v226 = vand.u32 %v225, 4294901760
  %227 = vmatpush1.msra.mxu0 %v226
  %228 = vmatprep.subr.mxu0 0.0
  %229 = vmatpush2.msra.mxu0 0.0
  %230 = vmatprep.subr.mxu0 0.0
  %231 = vmatpush2.msra.mxu0 0.0
  %232 = vmatprep.subr.mxu0 0.0
  %233 = vmatpush2.msra.mxu0 0.0
  %234 = vmatprep.subr.mxu0 0.0
  %235 = vmatpush2.msra.mxu0 0.0
  %236 = vmatprep.subr.mxu0 0.0
  %237 = vmatpush2.msra.mxu0 0.0
  %238 = vmatprep.subr.mxu0 0.0
  %239 = vmatpush2.msra.mxu0 0.0
  %240 = vmatprep.subr.mxu0 0.0
  %241 = vmatpush2.msra.mxu0 0.0
  %242 = vmatprep.subr.mxu0 0.0
  %243 = vmatpush2.msra.mxu0 0.0
  %244 = vmatprep.subr.mxu0 0.0
  %245 = vmatpush2.msra.mxu0 0.0
  %246 = vmatprep.subr.mxu0 0.0
  %247 = vmatpush2.msra.mxu0 0.0
  %248 = vmatprep.subr.mxu0 0.0
  %249 = vmatpush2.msra.mxu0 0.0
  %250 = vmatprep.subr.mxu0 0.0
  %251 = vmatpush2.msra.mxu0 0.0
  %252 = vmatprep.subr.mxu0 0.0
  %253 = vmatpush2.msra.mxu0 0.0
  %254 = vmatprep.subr.mxu0 0.0
  %255 = vmatpush2.msra.mxu0 0.0
  %256 = vmatprep.subr.mxu0 0.0
  %257 = vmatpush2.msra.mxu0 0.0
  %258 = vmatprep.subr.mxu0 0.0
  %259 = vmatpush2.msra.mxu0 0.0
  %260 = vmatprep.mubr.f32.mxu0 0.0
  %v261 = vand.u32 %v68, 4294901760
  %262 = vmatmul.mubr.f32.gmra.mxu0 %v261
  %v263 = vpop.f32.mrf.mxu0
  %v264 = vadd.f32 %v153, %v263
  %v265 = vpop.f32.mrf.mxu0
  %266 = vmatprep.mubr.f32.mxu0 0.0
  %v267 = vand.u32 %v71, 4294901760
  %268 = vmatmul.mubr.f32.gmra.mxu0 %v267
  %v269 = vpop.f32.mrf.mxu0
  %v270 = vadd.f32 %v163, %v269
  %v271 = vpop.f32.mrf.mxu0
  %272 = vmatprep.mubr.f32.mxu0 0.0
  %v273 = vand.u32 %v74, 4294901760
  %274 = vmatmul.mubr.f32.gmra.mxu0 %v273
  %v275 = vpop.f32.mrf.mxu0
  %v276 = vadd.f32 %v173, %v275
  %v277 = vpop.f32.mrf.mxu0
  %278 = vmatprep.mubr.f32.mxu0 0.0
  %v279 = vand.u32 %v77, 4294901760
  %280 = vmatmul.mubr.f32.gmra.mxu0 %v279
  %v281 = vpop.f32.mrf.mxu0
  %v282 = vadd.f32 %v183, %v281
  %v283 = vpop.f32.mrf.mxu0
  %284 = vdwg.mxu0
  %285 = vmatprep.subr.mxu0 0.0
  %286 = vmatpush1.msra.mxu0 0.0
  %287 = vmatprep.subr.mxu0 0.0
  %288 = vmatpush1.msra.mxu0 0.0
  %289 = vmatprep.subr.mxu0 0.0
  %290 = vmatpush1.msra.mxu0 0.0
  %291 = vmatprep.subr.mxu0 0.0
  %292 = vmatpush1.msra.mxu0 0.0
  %293 = vmatprep.subr.mxu0 0.0
  %294 = vmatpush1.msra.mxu0 0.0
  %295 = vmatprep.subr.mxu0 0.0
  %296 = vmatpush1.msra.mxu0 0.0
  %297 = vmatprep.subr.mxu0 0.0
  %298 = vmatpush1.msra.mxu0 0.0
  %299 = vmatprep.subr.mxu0 0.0
  %300 = vmatpush1.msra.mxu0 0.0
  %301 = vmatprep.subr.mxu0 0.0
  %302 = vmatpush1.msra.mxu0 0.0
  %303 = vmatprep.subr.mxu0 0.0
  %304 = vmatpush1.msra.mxu0 0.0
  %305 = vmatprep.subr.mxu0 0.0
  %306 = vmatpush1.msra.mxu0 0.0
  %307 = vmatprep.subr.mxu0 0.0
  %308 = vmatpush1.msra.mxu0 0.0
  %309 = vmatprep.subr.mxu0 0.0
  %310 = vmatpush1.msra.mxu0 0.0
  %311 = vmatprep.subr.mxu0 0.0
  %312 = vmatpush1.msra.mxu0 0.0
  %313 = vmatprep.subr.mxu0 0.0
  %v314 = vand.u32 %v27, 4294901760
  %v315 = vsub.f32 %v27, %v314
  %316 = vmatpush1.msra.mxu0 %v315
  %317 = vmatprep.subr.mxu0 0.0
  %v318 = vand.u32 %v26, 4294901760
  %v319 = vsub.f32 %v26, %v318
  %320 = vmatpush1.msra.mxu0 %v319
  %321 = vmatprep.subr.mxu0 0.0
  %322 = vmatpush2.msra.mxu0 0.0
  %323 = vmatprep.subr.mxu0 0.0
  %324 = vmatpush2.msra.mxu0 0.0
  %325 = vmatprep.subr.mxu0 0.0
  %326 = vmatpush2.msra.mxu0 0.0
  %327 = vmatprep.subr.mxu0 0.0
  %328 = vmatpush2.msra.mxu0 0.0
  %329 = vmatprep.subr.mxu0 0.0
  %330 = vmatpush2.msra.mxu0 0.0
  %331 = vmatprep.subr.mxu0 0.0
  %332 = vmatpush2.msra.mxu0 0.0
  %333 = vmatprep.subr.mxu0 0.0
  %334 = vmatpush2.msra.mxu0 0.0
  %335 = vmatprep.subr.mxu0 0.0
  %336 = vmatpush2.msra.mxu0 0.0
  %337 = vmatprep.subr.mxu0 0.0
  %338 = vmatpush2.msra.mxu0 0.0
  %339 = vmatprep.subr.mxu0 0.0
  %340 = vmatpush2.msra.mxu0 0.0
  %341 = vmatprep.subr.mxu0 0.0
  %342 = vmatpush2.msra.mxu0 0.0
  %343 = vmatprep.subr.mxu0 0.0
  %344 = vmatpush2.msra.mxu0 0.0
  %345 = vmatprep.subr.mxu0 0.0
  %346 = vmatpush2.msra.mxu0 0.0
  %347 = vmatprep.subr.mxu0 0.0
  %348 = vmatpush2.msra.mxu0 0.0
  %349 = vmatprep.subr.mxu0 0.0
  %350 = vmatpush2.msra.mxu0 0.0
  %351 = vmatprep.subr.mxu0 0.0
  %352 = vmatpush2.msra.mxu0 0.0
  %353 = vmatprep.mubr.f32.mxu0 0.0
  %v354 = vand.u32 %v68, 4294901760
  %v355 = vsub.f32 %v68, %v354
  %356 = vmatmul.mubr.f32.gmra.mxu0 %v355
  %v357 = vpop.f32.mrf.mxu0
  %v358 = vadd.f32 %v264, %v357
  %v359 = vpop.f32.mrf.mxu0
  %360 = vmatprep.mubr.f32.mxu0 0.0
  %v361 = vand.u32 %v71, 4294901760
  %v362 = vsub.f32 %v71, %v361
  %363 = vmatmul.mubr.f32.gmra.mxu0 %v362
  %v364 = vpop.f32.mrf.mxu0
  %v365 = vadd.f32 %v270, %v364
  %v366 = vpop.f32.mrf.mxu0
  %367 = vmatprep.mubr.f32.mxu0 0.0
  %v368 = vand.u32 %v74, 4294901760
  %v369 = vsub.f32 %v74, %v368
  %370 = vmatmul.mubr.f32.gmra.mxu0 %v369
  %v371 = vpop.f32.mrf.mxu0
  %v372 = vadd.f32 %v276, %v371
  %v373 = vpop.f32.mrf.mxu0
  %374 = vmatprep.mubr.f32.mxu0 0.0
  %v375 = vand.u32 %v77, 4294901760
  %v376 = vsub.f32 %v77, %v375
  %377 = vmatmul.mubr.f32.gmra.mxu0 %v376
  %v378 = vpop.f32.mrf.mxu0
  %v379 = vadd.f32 %v282, %v378
  %v380 = vpop.f32.mrf.mxu0
  %381 = vdwg.mxu0
  %382 = vmatprep.subr.mxu0 0.0
  %383 = vmatpush1.msra.mxu0 0.0
  %384 = vmatprep.subr.mxu0 0.0
  %385 = vmatpush1.msra.mxu0 0.0
  %386 = vmatprep.subr.mxu0 0.0
  %387 = vmatpush1.msra.mxu0 0.0
  %388 = vmatprep.subr.mxu0 0.0
  %389 = vmatpush1.msra.mxu0 0.0
  %390 = vmatprep.subr.mxu0 0.0
  %391 = vmatpush1.msra.mxu0 0.0
  %392 = vmatprep.subr.mxu0 0.0
  %393 = vmatpush1.msra.mxu0 0.0
  %394 = vmatprep.subr.mxu0 0.0
  %395 = vmatpush1.msra.mxu0 0.0
  %396 = vmatprep.subr.mxu0 0.0
  %397 = vmatpush1.msra.mxu0 0.0
  %398 = vmatprep.subr.mxu0 0.0
  %399 = vmatpush1.msra.mxu0 0.0
  %400 = vmatprep.subr.mxu0 0.0
  %401 = vmatpush1.msra.mxu0 0.0
  %402 = vmatprep.subr.mxu0 0.0
  %403 = vmatpush1.msra.mxu0 0.0
  %404 = vmatprep.subr.mxu0 0.0
  %405 = vmatpush1.msra.mxu0 0.0
  %406 = vmatprep.subr.mxu0 0.0
  %407 = vmatpush1.msra.mxu0 0.0
  %408 = vmatprep.subr.mxu0 0.0
  %409 = vmatpush1.msra.mxu0 0.0
  %410 = vmatprep.subr.mxu0 0.0
  %v411 = vand.u32 %v27, 4294901760
  %412 = vmatpush1.msra.mxu0 %v411
  %413 = vmatprep.subr.mxu0 0.0
  %v414 = vand.u32 %v26, 4294901760
  %415 = vmatpush1.msra.mxu0 %v414
  %416 = vmatprep.subr.mxu0 0.0
  %417 = vmatpush2.msra.mxu0 0.0
  %418 = vmatprep.subr.mxu0 0.0
  %419 = vmatpush2.msra.mxu0 0.0
  %420 = vmatprep.subr.mxu0 0.0
  %421 = vmatpush2.msra.mxu0 0.0
  %422 = vmatprep.subr.mxu0 0.0
  %423 = vmatpush2.msra.mxu0 0.0
  %424 = vmatprep.subr.mxu0 0.0
  %425 = vmatpush2.msra.mxu0 0.0
  %426 = vmatprep.subr.mxu0 0.0
  %427 = vmatpush2.msra.mxu0 0.0
  %428 = vmatprep.subr.mxu0 0.0
  %429 = vmatpush2.msra.mxu0 0.0
  %430 = vmatprep.subr.mxu0 0.0
  %431 = vmatpush2.msra.mxu0 0.0
  %432 = vmatprep.subr.mxu0 0.0
  %433 = vmatpush2.msra.mxu0 0.0
  %434 = vmatprep.subr.mxu0 0.0
  %435 = vmatpush2.msra.mxu0 0.0
  %436 = vmatprep.subr.mxu0 0.0
  %437 = vmatpush2.msra.mxu0 0.0
  %438 = vmatprep.subr.mxu0 0.0
  %439 = vmatpush2.msra.mxu0 0.0
  %440 = vmatprep.subr.mxu0 0.0
  %441 = vmatpush2.msra.mxu0 0.0
  %442 = vmatprep.subr.mxu0 0.0
  %443 = vmatpush2.msra.mxu0 0.0
  %444 = vmatprep.subr.mxu0 0.0
  %445 = vmatpush2.msra.mxu0 0.0
  %446 = vmatprep.subr.mxu0 0.0
  %447 = vmatpush2.msra.mxu0 0.0
  %448 = vmatprep.mubr.f32.mxu0 0.0
  %v449 = vand.u32 %v68, 4294901760
  %v450 = vsub.f32 %v68, %v449
  %v451 = vand.u32 %v450, 4294901760
  %452 = vmatmul.mubr.f32.gmra.mxu0 %v451
  %v453 = vpop.f32.mrf.mxu0
  %v454 = vadd.f32 %v358, %v453
  %v455 = vpop.f32.mrf.mxu0
  %456 = vmatprep.mubr.f32.mxu0 0.0
  %v457 = vand.u32 %v71, 4294901760
  %v458 = vsub.f32 %v71, %v457
  %v459 = vand.u32 %v458, 4294901760
  %460 = vmatmul.mubr.f32.gmra.mxu0 %v459
  %v461 = vpop.f32.mrf.mxu0
  %v462 = vadd.f32 %v365, %v461
  %v463 = vpop.f32.mrf.mxu0
  %464 = vmatprep.mubr.f32.mxu0 0.0
  %v465 = vand.u32 %v74, 4294901760
  %v466 = vsub.f32 %v74, %v465
  %v467 = vand.u32 %v466, 4294901760
  %468 = vmatmul.mubr.f32.gmra.mxu0 %v467
  %v469 = vpop.f32.mrf.mxu0
  %v470 = vadd.f32 %v372, %v469
  %v471 = vpop.f32.mrf.mxu0
  %472 = vmatprep.mubr.f32.mxu0 0.0
  %v473 = vand.u32 %v77, 4294901760
  %v474 = vsub.f32 %v77, %v473
  %v475 = vand.u32 %v474, 4294901760
  %476 = vmatmul.mubr.f32.gmra.mxu0 %v475
  %v477 = vpop.f32.mrf.mxu0
  %v478 = vadd.f32 %v379, %v477
  %v479 = vpop.f32.mrf.mxu0
  %480 = vdwg.mxu0
  %481 = vmatprep.subr.mxu0 0.0
  %482 = vmatpush1.msra.mxu0 0.0
  %483 = vmatprep.subr.mxu0 0.0
  %484 = vmatpush1.msra.mxu0 0.0
  %485 = vmatprep.subr.mxu0 0.0
  %486 = vmatpush1.msra.mxu0 0.0
  %487 = vmatprep.subr.mxu0 0.0
  %488 = vmatpush1.msra.mxu0 0.0
  %489 = vmatprep.subr.mxu0 0.0
  %490 = vmatpush1.msra.mxu0 0.0
  %491 = vmatprep.subr.mxu0 0.0
  %492 = vmatpush1.msra.mxu0 0.0
  %493 = vmatprep.subr.mxu0 0.0
  %494 = vmatpush1.msra.mxu0 0.0
  %495 = vmatprep.subr.mxu0 0.0
  %496 = vmatpush1.msra.mxu0 0.0
  %497 = vmatprep.subr.mxu0 0.0
  %498 = vmatpush1.msra.mxu0 0.0
  %499 = vmatprep.subr.mxu0 0.0
  %500 = vmatpush1.msra.mxu0 0.0
  %501 = vmatprep.subr.mxu0 0.0
  %502 = vmatpush1.msra.mxu0 0.0
  %503 = vmatprep.subr.mxu0 0.0
  %504 = vmatpush1.msra.mxu0 0.0
  %505 = vmatprep.subr.mxu0 0.0
  %506 = vmatpush1.msra.mxu0 0.0
  %507 = vmatprep.subr.mxu0 0.0
  %508 = vmatpush1.msra.mxu0 0.0
  %509 = vmatprep.subr.mxu0 0.0
  %v510 = vand.u32 %v27, 4294901760
  %v511 = vsub.f32 %v27, %v510
  %v512 = vand.u32 %v511, 4294901760
  %513 = vmatpush1.msra.mxu0 %v512
  %514 = vmatprep.subr.mxu0 0.0
  %v515 = vand.u32 %v26, 4294901760
  %v516 = vsub.f32 %v26, %v515
  %v517 = vand.u32 %v516, 4294901760
  %518 = vmatpush1.msra.mxu0 %v517
  %519 = vmatprep.subr.mxu0 0.0
  %520 = vmatpush2.msra.mxu0 0.0
  %521 = vmatprep.subr.mxu0 0.0
  %522 = vmatpush2.msra.mxu0 0.0
  %523 = vmatprep.subr.mxu0 0.0
  %524 = vmatpush2.msra.mxu0 0.0
  %525 = vmatprep.subr.mxu0 0.0
  %526 = vmatpush2.msra.mxu0 0.0
  %527 = vmatprep.subr.mxu0 0.0
  %528 = vmatpush2.msra.mxu0 0.0
  %529 = vmatprep.subr.mxu0 0.0
  %530 = vmatpush2.msra.mxu0 0.0
  %531 = vmatprep.subr.mxu0 0.0
  %532 = vmatpush2.msra.mxu0 0.0
  %533 = vmatprep.subr.mxu0 0.0
  %534 = vmatpush2.msra.mxu0 0.0
  %535 = vmatprep.subr.mxu0 0.0
  %536 = vmatpush2.msra.mxu0 0.0
  %537 = vmatprep.subr.mxu0 0.0
  %538 = vmatpush2.msra.mxu0 0.0
  %539 = vmatprep.subr.mxu0 0.0
  %540 = vmatpush2.msra.mxu0 0.0
  %541 = vmatprep.subr.mxu0 0.0
  %542 = vmatpush2.msra.mxu0 0.0
  %543 = vmatprep.subr.mxu0 0.0
  %544 = vmatpush2.msra.mxu0 0.0
  %545 = vmatprep.subr.mxu0 0.0
  %546 = vmatpush2.msra.mxu0 0.0
  %547 = vmatprep.subr.mxu0 0.0
  %548 = vmatpush2.msra.mxu0 0.0
  %549 = vmatprep.subr.mxu0 0.0
  %550 = vmatpush2.msra.mxu0 0.0
  %551 = vmatprep.mubr.f32.mxu0 0.0
  %v552 = vand.u32 %v68, 4294901760
  %553 = vmatmul.mubr.f32.gmra.mxu0 %v552
  %v554 = vpop.f32.mrf.mxu0
  %v555 = vadd.f32 %v454, %v554
  %v556 = vpop.f32.mrf.mxu0
  %557 = vmatprep.mubr.f32.mxu0 0.0
  %v558 = vand.u32 %v71, 4294901760
  %559 = vmatmul.mubr.f32.gmra.mxu0 %v558
  %v560 = vpop.f32.mrf.mxu0
  %v561 = vadd.f32 %v462, %v560
  %v562 = vpop.f32.mrf.mxu0
  %563 = vmatprep.mubr.f32.mxu0 0.0
  %v564 = vand.u32 %v74, 4294901760
  %565 = vmatmul.mubr.f32.gmra.mxu0 %v564
  %v566 = vpop.f32.mrf.mxu0
  %v567 = vadd.f32 %v470, %v566
  %v568 = vpop.f32.mrf.mxu0
  %569 = vmatprep.mubr.f32.mxu0 0.0
  %v570 = vand.u32 %v77, 4294901760
  %571 = vmatmul.mubr.f32.gmra.mxu0 %v570
  %v572 = vpop.f32.mrf.mxu0
  %v573 = vadd.f32 %v478, %v572
  %v574 = vpop.f32.mrf.mxu0
  %575 = vdwg.mxu0
  %576 = vmatprep.subr.mxu0 0.0
  %577 = vmatpush1.msra.mxu0 0.0
  %578 = vmatprep.subr.mxu0 0.0
  %579 = vmatpush1.msra.mxu0 0.0
  %580 = vmatprep.subr.mxu0 0.0
  %581 = vmatpush1.msra.mxu0 0.0
  %582 = vmatprep.subr.mxu0 0.0
  %583 = vmatpush1.msra.mxu0 0.0
  %584 = vmatprep.subr.mxu0 0.0
  %585 = vmatpush1.msra.mxu0 0.0
  %586 = vmatprep.subr.mxu0 0.0
  %587 = vmatpush1.msra.mxu0 0.0
  %588 = vmatprep.subr.mxu0 0.0
  %589 = vmatpush1.msra.mxu0 0.0
  %590 = vmatprep.subr.mxu0 0.0
  %591 = vmatpush1.msra.mxu0 0.0
  %592 = vmatprep.subr.mxu0 0.0
  %593 = vmatpush1.msra.mxu0 0.0
  %594 = vmatprep.subr.mxu0 0.0
  %595 = vmatpush1.msra.mxu0 0.0
  %596 = vmatprep.subr.mxu0 0.0
  %597 = vmatpush1.msra.mxu0 0.0
  %598 = vmatprep.subr.mxu0 0.0
  %599 = vmatpush1.msra.mxu0 0.0
  %600 = vmatprep.subr.mxu0 0.0
  %601 = vmatpush1.msra.mxu0 0.0
  %602 = vmatprep.subr.mxu0 0.0
  %603 = vmatpush1.msra.mxu0 0.0
  %604 = vmatprep.subr.mxu0 0.0
  %v605 = vand.u32 %v27, 4294901760
  %606 = vmatpush1.msra.mxu0 %v605
  %607 = vmatprep.subr.mxu0 0.0
  %v608 = vand.u32 %v26, 4294901760
  %609 = vmatpush1.msra.mxu0 %v608
  %610 = vmatprep.subr.mxu0 0.0
  %611 = vmatpush2.msra.mxu0 0.0
  %612 = vmatprep.subr.mxu0 0.0
  %613 = vmatpush2.msra.mxu0 0.0
  %614 = vmatprep.subr.mxu0 0.0
  %615 = vmatpush2.msra.mxu0 0.0
  %616 = vmatprep.subr.mxu0 0.0
  %617 = vmatpush2.msra.mxu0 0.0
  %618 = vmatprep.subr.mxu0 0.0
  %619 = vmatpush2.msra.mxu0 0.0
  %620 = vmatprep.subr.mxu0 0.0
  %621 = vmatpush2.msra.mxu0 0.0
  %622 = vmatprep.subr.mxu0 0.0
  %623 = vmatpush2.msra.mxu0 0.0
  %624 = vmatprep.subr.mxu0 0.0
  %625 = vmatpush2.msra.mxu0 0.0
  %626 = vmatprep.subr.mxu0 0.0
  %627 = vmatpush2.msra.mxu0 0.0
  %628 = vmatprep.subr.mxu0 0.0
  %629 = vmatpush2.msra.mxu0 0.0
  %630 = vmatprep.subr.mxu0 0.0
  %631 = vmatpush2.msra.mxu0 0.0
  %632 = vmatprep.subr.mxu0 0.0
  %633 = vmatpush2.msra.mxu0 0.0
  %634 = vmatprep.subr.mxu0 0.0
  %635 = vmatpush2.msra.mxu0 0.0
  %636 = vmatprep.subr.mxu0 0.0
  %637 = vmatpush2.msra.mxu0 0.0
  %638 = vmatprep.subr.mxu0 0.0
  %639 = vmatpush2.msra.mxu0 0.0
  %640 = vmatprep.subr.mxu0 0.0
  %641 = vmatpush2.msra.mxu0 0.0
  %642 = vmatprep.mubr.f32.mxu0 0.0
  %v643 = vand.u32 %v68, 4294901760
  %644 = vmatmul.mubr.f32.gmra.mxu0 %v643
  %v645 = vpop.f32.mrf.mxu0
  %v646 = vadd.f32 %v555, %v645
  %v647 = vpop.f32.mrf.mxu0
  %648 = vmatprep.mubr.f32.mxu0 0.0
  %v649 = vand.u32 %v71, 4294901760
  %650 = vmatmul.mubr.f32.gmra.mxu0 %v649
  %v651 = vpop.f32.mrf.mxu0
  %v652 = vadd.f32 %v561, %v651
  %v653 = vpop.f32.mrf.mxu0
  %654 = vmatprep.mubr.f32.mxu0 0.0
  %v655 = vand.u32 %v74, 4294901760
  %656 = vmatmul.mubr.f32.gmra.mxu0 %v655
  %v657 = vpop.f32.mrf.mxu0
  %v658 = vadd.f32 %v567, %v657
  %v659 = vpop.f32.mrf.mxu0
  %660 = vmatprep.mubr.f32.mxu0 0.0
  %v661 = vand.u32 %v77, 4294901760
  %662 = vmatmul.mubr.f32.gmra.mxu0 %v661
  %v663 = vpop.f32.mrf.mxu0
  %v664 = vadd.f32 %v573, %v663
  %v665 = vpop.f32.mrf.mxu0
  %666 = vdwg.mxu0
  %v667 = vmax.f32 %v646, 0.0
  %v668 = vmax.f32 %v652, 0.0
  %v669 = vmax.f32 %v658, 0.0
  %v670 = vmax.f32 %v664, 0.0
  %672 = vset.pattern.permute.xlu0 0
  %673 = vperm.xlu0 %672, %v40
  %v674 = vpop.permute.xlu0 %673
  %677 = vset.pattern.permute.xlu0 0
  %678 = vperm.xlu0 %677, %v41
  %v679 = vpop.permute.xlu0 %678
  %682 = vset.pattern.permute.xlu0 0
  %683 = vperm.xlu0 %682, %v42
  %v684 = vpop.permute.xlu0 %683
  %687 = vset.pattern.permute.xlu0 0
  %688 = vperm.xlu0 %687, %v43
  %v689 = vpop.permute.xlu0 %688
  %vm691 = vcmask 261120
  %v693 = vsel %vm691, %v36, 0
  %v696 = vsel %vm691, %v37, 0
  %v699 = vsel %vm691, %v38, 0
  %v702 = vsel %vm691, %v39, 0
  %704 = vmatprep.subr.mxu0 0.0
  %705 = vmatpush1.msra.mxu0 0.0
  %706 = vmatprep.subr.mxu0 0.0
  %707 = vmatpush1.msra.mxu0 0.0
  %708 = vmatprep.subr.mxu0 0.0
  %709 = vmatpush1.msra.mxu0 0.0
  %710 = vmatprep.subr.mxu0 0.0
  %711 = vmatpush1.msra.mxu0 0.0
  %712 = vmatprep.subr.mxu0 0.0
  %713 = vmatpush1.msra.mxu0 0.0
  %714 = vmatprep.subr.mxu0 0.0
  %715 = vmatpush1.msra.mxu0 0.0
  %716 = vmatprep.subr.mxu0 0.0
  %717 = vmatpush1.msra.mxu0 0.0
  %718 = vmatprep.subr.mxu0 0.0
  %719 = vmatpush1.msra.mxu0 0.0
  %720 = vmatprep.subr.mxu0 0.0
  %721 = vmatpush1.msra.mxu0 0.0
  %722 = vmatprep.subr.mxu0 0.0
  %723 = vmatpush1.msra.mxu0 0.0
  %724 = vmatprep.subr.mxu0 0.0
  %725 = vmatpush1.msra.mxu0 0.0
  %726 = vmatprep.subr.mxu0 0.0
  %727 = vmatpush1.msra.mxu0 0.0
  %728 = vmatprep.subr.mxu0 0.0
  %v729 = vand.u32 %v670, 4294901760
  %730 = vmatpush1.msra.mxu0 %v729
  %731 = vmatprep.subr.mxu0 0.0
  %v732 = vand.u32 %v669, 4294901760
  %733 = vmatpush1.msra.mxu0 %v732
  %734 = vmatprep.subr.mxu0 0.0
  %v735 = vand.u32 %v668, 4294901760
  %736 = vmatpush1.msra.mxu0 %v735
  %737 = vmatprep.subr.mxu0 0.0
  %v738 = vand.u32 %v667, 4294901760
  %739 = vmatpush1.msra.mxu0 %v738
  %740 = vmatprep.subr.mxu0 0.0
  %741 = vmatpush2.msra.mxu0 0.0
  %742 = vmatprep.subr.mxu0 0.0
  %743 = vmatpush2.msra.mxu0 0.0
  %744 = vmatprep.subr.mxu0 0.0
  %745 = vmatpush2.msra.mxu0 0.0
  %746 = vmatprep.subr.mxu0 0.0
  %747 = vmatpush2.msra.mxu0 0.0
  %748 = vmatprep.subr.mxu0 0.0
  %749 = vmatpush2.msra.mxu0 0.0
  %750 = vmatprep.subr.mxu0 0.0
  %751 = vmatpush2.msra.mxu0 0.0
  %752 = vmatprep.subr.mxu0 0.0
  %753 = vmatpush2.msra.mxu0 0.0
  %754 = vmatprep.subr.mxu0 0.0
  %755 = vmatpush2.msra.mxu0 0.0
  %756 = vmatprep.subr.mxu0 0.0
  %757 = vmatpush2.msra.mxu0 0.0
  %758 = vmatprep.subr.mxu0 0.0
  %759 = vmatpush2.msra.mxu0 0.0
  %760 = vmatprep.subr.mxu0 0.0
  %761 = vmatpush2.msra.mxu0 0.0
  %762 = vmatprep.subr.mxu0 0.0
  %763 = vmatpush2.msra.mxu0 0.0
  %764 = vmatprep.subr.mxu0 0.0
  %765 = vmatpush2.msra.mxu0 0.0
  %766 = vmatprep.subr.mxu0 0.0
  %767 = vmatpush2.msra.mxu0 0.0
  %768 = vmatprep.subr.mxu0 0.0
  %769 = vmatpush2.msra.mxu0 0.0
  %770 = vmatprep.subr.mxu0 0.0
  %771 = vmatpush2.msra.mxu0 0.0
  %772 = vmatprep.mubr.f32.mxu0 0.0
  %v773 = vand.u32 %v693, 4294901760
  %v774 = vsub.f32 %v693, %v773
  %v775 = vand.u32 %v774, 4294901760
  %v776 = vsub.f32 %v774, %v775
  %v777 = vand.u32 %v776, 4294901760
  %778 = vmatmul.mubr.f32.gmra.mxu0 %v777
  %v779 = vpop.f32.mrf.mxu0
  %v780 = vadd.f32 %v674, %v779
  %v781 = vpop.f32.mrf.mxu0
  %782 = vmatprep.mubr.f32.mxu0 0.0
  %v783 = vand.u32 %v696, 4294901760
  %v784 = vsub.f32 %v696, %v783
  %v785 = vand.u32 %v784, 4294901760
  %v786 = vsub.f32 %v784, %v785
  %v787 = vand.u32 %v786, 4294901760
  %788 = vmatmul.mubr.f32.gmra.mxu0 %v787
  %v789 = vpop.f32.mrf.mxu0
  %v790 = vadd.f32 %v679, %v789
  %v791 = vpop.f32.mrf.mxu0
  %792 = vmatprep.mubr.f32.mxu0 0.0
  %v793 = vand.u32 %v699, 4294901760
  %v794 = vsub.f32 %v699, %v793
  %v795 = vand.u32 %v794, 4294901760
  %v796 = vsub.f32 %v794, %v795
  %v797 = vand.u32 %v796, 4294901760
  %798 = vmatmul.mubr.f32.gmra.mxu0 %v797
  %v799 = vpop.f32.mrf.mxu0
  %v800 = vadd.f32 %v684, %v799
  %v801 = vpop.f32.mrf.mxu0
  %802 = vmatprep.mubr.f32.mxu0 0.0
  %v803 = vand.u32 %v702, 4294901760
  %v804 = vsub.f32 %v702, %v803
  %v805 = vand.u32 %v804, 4294901760
  %v806 = vsub.f32 %v804, %v805
  %v807 = vand.u32 %v806, 4294901760
  %808 = vmatmul.mubr.f32.gmra.mxu0 %v807
  %v809 = vpop.f32.mrf.mxu0
  %v810 = vadd.f32 %v689, %v809
  %v811 = vpop.f32.mrf.mxu0
  %812 = vdwg.mxu0
  %813 = vmatprep.subr.mxu0 0.0
  %814 = vmatpush1.msra.mxu0 0.0
  %815 = vmatprep.subr.mxu0 0.0
  %816 = vmatpush1.msra.mxu0 0.0
  %817 = vmatprep.subr.mxu0 0.0
  %818 = vmatpush1.msra.mxu0 0.0
  %819 = vmatprep.subr.mxu0 0.0
  %820 = vmatpush1.msra.mxu0 0.0
  %821 = vmatprep.subr.mxu0 0.0
  %822 = vmatpush1.msra.mxu0 0.0
  %823 = vmatprep.subr.mxu0 0.0
  %824 = vmatpush1.msra.mxu0 0.0
  %825 = vmatprep.subr.mxu0 0.0
  %826 = vmatpush1.msra.mxu0 0.0
  %827 = vmatprep.subr.mxu0 0.0
  %828 = vmatpush1.msra.mxu0 0.0
  %829 = vmatprep.subr.mxu0 0.0
  %830 = vmatpush1.msra.mxu0 0.0
  %831 = vmatprep.subr.mxu0 0.0
  %832 = vmatpush1.msra.mxu0 0.0
  %833 = vmatprep.subr.mxu0 0.0
  %834 = vmatpush1.msra.mxu0 0.0
  %835 = vmatprep.subr.mxu0 0.0
  %836 = vmatpush1.msra.mxu0 0.0
  %837 = vmatprep.subr.mxu0 0.0
  %v838 = vand.u32 %v670, 4294901760
  %v839 = vsub.f32 %v670, %v838
  %v840 = vand.u32 %v839, 4294901760
  %v841 = vsub.f32 %v839, %v840
  %v842 = vand.u32 %v841, 4294901760
  %843 = vmatpush1.msra.mxu0 %v842
  %844 = vmatprep.subr.mxu0 0.0
  %v845 = vand.u32 %v669, 4294901760
  %v846 = vsub.f32 %v669, %v845
  %v847 = vand.u32 %v846, 4294901760
  %v848 = vsub.f32 %v846, %v847
  %v849 = vand.u32 %v848, 4294901760
  %850 = vmatpush1.msra.mxu0 %v849
  %851 = vmatprep.subr.mxu0 0.0
  %v852 = vand.u32 %v668, 4294901760
  %v853 = vsub.f32 %v668, %v852
  %v854 = vand.u32 %v853, 4294901760
  %v855 = vsub.f32 %v853, %v854
  %v856 = vand.u32 %v855, 4294901760
  %857 = vmatpush1.msra.mxu0 %v856
  %858 = vmatprep.subr.mxu0 0.0
  %v859 = vand.u32 %v667, 4294901760
  %v860 = vsub.f32 %v667, %v859
  %v861 = vand.u32 %v860, 4294901760
  %v862 = vsub.f32 %v860, %v861
  %v863 = vand.u32 %v862, 4294901760
  %864 = vmatpush1.msra.mxu0 %v863
  %865 = vmatprep.subr.mxu0 0.0
  %866 = vmatpush2.msra.mxu0 0.0
  %867 = vmatprep.subr.mxu0 0.0
  %868 = vmatpush2.msra.mxu0 0.0
  %869 = vmatprep.subr.mxu0 0.0
  %870 = vmatpush2.msra.mxu0 0.0
  %871 = vmatprep.subr.mxu0 0.0
  %872 = vmatpush2.msra.mxu0 0.0
  %873 = vmatprep.subr.mxu0 0.0
  %874 = vmatpush2.msra.mxu0 0.0
  %875 = vmatprep.subr.mxu0 0.0
  %876 = vmatpush2.msra.mxu0 0.0
  %877 = vmatprep.subr.mxu0 0.0
  %878 = vmatpush2.msra.mxu0 0.0
  %879 = vmatprep.subr.mxu0 0.0
  %880 = vmatpush2.msra.mxu0 0.0
  %881 = vmatprep.subr.mxu0 0.0
  %882 = vmatpush2.msra.mxu0 0.0
  %883 = vmatprep.subr.mxu0 0.0
  %884 = vmatpush2.msra.mxu0 0.0
  %885 = vmatprep.subr.mxu0 0.0
  %886 = vmatpush2.msra.mxu0 0.0
  %887 = vmatprep.subr.mxu0 0.0
  %888 = vmatpush2.msra.mxu0 0.0
  %889 = vmatprep.subr.mxu0 0.0
  %890 = vmatpush2.msra.mxu0 0.0
  %891 = vmatprep.subr.mxu0 0.0
  %892 = vmatpush2.msra.mxu0 0.0
  %893 = vmatprep.subr.mxu0 0.0
  %894 = vmatpush2.msra.mxu0 0.0
  %895 = vmatprep.subr.mxu0 0.0
  %896 = vmatpush2.msra.mxu0 0.0
  %897 = vmatprep.mubr.f32.mxu0 0.0
  %v898 = vand.u32 %v693, 4294901760
  %899 = vmatmul.mubr.f32.gmra.mxu0 %v898
  %v900 = vpop.f32.mrf.mxu0
  %v901 = vadd.f32 %v780, %v900
  %v902 = vpop.f32.mrf.mxu0
  %903 = vmatprep.mubr.f32.mxu0 0.0
  %v904 = vand.u32 %v696, 4294901760
  %905 = vmatmul.mubr.f32.gmra.mxu0 %v904
  %v906 = vpop.f32.mrf.mxu0
  %v907 = vadd.f32 %v790, %v906
  %v908 = vpop.f32.mrf.mxu0
  %909 = vmatprep.mubr.f32.mxu0 0.0
  %v910 = vand.u32 %v699, 4294901760
  %911 = vmatmul.mubr.f32.gmra.mxu0 %v910
  %v912 = vpop.f32.mrf.mxu0
  %v913 = vadd.f32 %v800, %v912
  %v914 = vpop.f32.mrf.mxu0
  %915 = vmatprep.mubr.f32.mxu0 0.0
  %v916 = vand.u32 %v702, 4294901760
  %917 = vmatmul.mubr.f32.gmra.mxu0 %v916
  %v918 = vpop.f32.mrf.mxu0
  %v919 = vadd.f32 %v810, %v918
  %v920 = vpop.f32.mrf.mxu0
  %921 = vdwg.mxu0
  %922 = vmatprep.subr.mxu0 0.0
  %923 = vmatpush1.msra.mxu0 0.0
  %924 = vmatprep.subr.mxu0 0.0
  %925 = vmatpush1.msra.mxu0 0.0
  %926 = vmatprep.subr.mxu0 0.0
  %927 = vmatpush1.msra.mxu0 0.0
  %928 = vmatprep.subr.mxu0 0.0
  %929 = vmatpush1.msra.mxu0 0.0
  %930 = vmatprep.subr.mxu0 0.0
  %931 = vmatpush1.msra.mxu0 0.0
  %932 = vmatprep.subr.mxu0 0.0
  %933 = vmatpush1.msra.mxu0 0.0
  %934 = vmatprep.subr.mxu0 0.0
  %935 = vmatpush1.msra.mxu0 0.0
  %936 = vmatprep.subr.mxu0 0.0
  %937 = vmatpush1.msra.mxu0 0.0
  %938 = vmatprep.subr.mxu0 0.0
  %939 = vmatpush1.msra.mxu0 0.0
  %940 = vmatprep.subr.mxu0 0.0
  %941 = vmatpush1.msra.mxu0 0.0
  %942 = vmatprep.subr.mxu0 0.0
  %943 = vmatpush1.msra.mxu0 0.0
  %944 = vmatprep.subr.mxu0 0.0
  %945 = vmatpush1.msra.mxu0 0.0
  %946 = vmatprep.subr.mxu0 0.0
  %v947 = vand.u32 %v670, 4294901760
  %v948 = vsub.f32 %v670, %v947
  %949 = vmatpush1.msra.mxu0 %v948
  %950 = vmatprep.subr.mxu0 0.0
  %v951 = vand.u32 %v669, 4294901760
  %v952 = vsub.f32 %v669, %v951
  %953 = vmatpush1.msra.mxu0 %v952
  %954 = vmatprep.subr.mxu0 0.0
  %v955 = vand.u32 %v668, 4294901760
  %v956 = vsub.f32 %v668, %v955
  %957 = vmatpush1.msra.mxu0 %v956
  %958 = vmatprep.subr.mxu0 0.0
  %v959 = vand.u32 %v667, 4294901760
  %v960 = vsub.f32 %v667, %v959
  %961 = vmatpush1.msra.mxu0 %v960
  %962 = vmatprep.subr.mxu0 0.0
  %963 = vmatpush2.msra.mxu0 0.0
  %964 = vmatprep.subr.mxu0 0.0
  %965 = vmatpush2.msra.mxu0 0.0
  %966 = vmatprep.subr.mxu0 0.0
  %967 = vmatpush2.msra.mxu0 0.0
  %968 = vmatprep.subr.mxu0 0.0
  %969 = vmatpush2.msra.mxu0 0.0
  %970 = vmatprep.subr.mxu0 0.0
  %971 = vmatpush2.msra.mxu0 0.0
  %972 = vmatprep.subr.mxu0 0.0
  %973 = vmatpush2.msra.mxu0 0.0
  %974 = vmatprep.subr.mxu0 0.0
  %975 = vmatpush2.msra.mxu0 0.0
  %976 = vmatprep.subr.mxu0 0.0
  %977 = vmatpush2.msra.mxu0 0.0
  %978 = vmatprep.subr.mxu0 0.0
  %979 = vmatpush2.msra.mxu0 0.0
  %980 = vmatprep.subr.mxu0 0.0
  %981 = vmatpush2.msra.mxu0 0.0
  %982 = vmatprep.subr.mxu0 0.0
  %983 = vmatpush2.msra.mxu0 0.0
  %984 = vmatprep.subr.mxu0 0.0
  %985 = vmatpush2.msra.mxu0 0.0
  %986 = vmatprep.subr.mxu0 0.0
  %987 = vmatpush2.msra.mxu0 0.0
  %988 = vmatprep.subr.mxu0 0.0
  %989 = vmatpush2.msra.mxu0 0.0
  %990 = vmatprep.subr.mxu0 0.0
  %991 = vmatpush2.msra.mxu0 0.0
  %992 = vmatprep.subr.mxu0 0.0
  %993 = vmatpush2.msra.mxu0 0.0
  %994 = vmatprep.mubr.f32.mxu0 0.0
  %v995 = vand.u32 %v693, 4294901760
  %v996 = vsub.f32 %v693, %v995
  %997 = vmatmul.mubr.f32.gmra.mxu0 %v996
  %v998 = vpop.f32.mrf.mxu0
  %v999 = vadd.f32 %v901, %v998
  %v1000 = vpop.f32.mrf.mxu0
  %1001 = vmatprep.mubr.f32.mxu0 0.0
  %v1002 = vand.u32 %v696, 4294901760
  %v1003 = vsub.f32 %v696, %v1002
  %1004 = vmatmul.mubr.f32.gmra.mxu0 %v1003
  %v1005 = vpop.f32.mrf.mxu0
  %v1006 = vadd.f32 %v907, %v1005
  %v1007 = vpop.f32.mrf.mxu0
  %1008 = vmatprep.mubr.f32.mxu0 0.0
  %v1009 = vand.u32 %v699, 4294901760
  %v1010 = vsub.f32 %v699, %v1009
  %1011 = vmatmul.mubr.f32.gmra.mxu0 %v1010
  %v1012 = vpop.f32.mrf.mxu0
  %v1013 = vadd.f32 %v913, %v1012
  %v1014 = vpop.f32.mrf.mxu0
  %1015 = vmatprep.mubr.f32.mxu0 0.0
  %v1016 = vand.u32 %v702, 4294901760
  %v1017 = vsub.f32 %v702, %v1016
  %1018 = vmatmul.mubr.f32.gmra.mxu0 %v1017
  %v1019 = vpop.f32.mrf.mxu0
  %v1020 = vadd.f32 %v919, %v1019
  %v1021 = vpop.f32.mrf.mxu0
  %1022 = vdwg.mxu0
  %1023 = vmatprep.subr.mxu0 0.0
  %1024 = vmatpush1.msra.mxu0 0.0
  %1025 = vmatprep.subr.mxu0 0.0
  %1026 = vmatpush1.msra.mxu0 0.0
  %1027 = vmatprep.subr.mxu0 0.0
  %1028 = vmatpush1.msra.mxu0 0.0
  %1029 = vmatprep.subr.mxu0 0.0
  %1030 = vmatpush1.msra.mxu0 0.0
  %1031 = vmatprep.subr.mxu0 0.0
  %1032 = vmatpush1.msra.mxu0 0.0
  %1033 = vmatprep.subr.mxu0 0.0
  %1034 = vmatpush1.msra.mxu0 0.0
  %1035 = vmatprep.subr.mxu0 0.0
  %1036 = vmatpush1.msra.mxu0 0.0
  %1037 = vmatprep.subr.mxu0 0.0
  %1038 = vmatpush1.msra.mxu0 0.0
  %1039 = vmatprep.subr.mxu0 0.0
  %1040 = vmatpush1.msra.mxu0 0.0
  %1041 = vmatprep.subr.mxu0 0.0
  %1042 = vmatpush1.msra.mxu0 0.0
  %1043 = vmatprep.subr.mxu0 0.0
  %1044 = vmatpush1.msra.mxu0 0.0
  %1045 = vmatprep.subr.mxu0 0.0
  %1046 = vmatpush1.msra.mxu0 0.0
  %1047 = vmatprep.subr.mxu0 0.0
  %v1048 = vand.u32 %v670, 4294901760
  %1049 = vmatpush1.msra.mxu0 %v1048
  %1050 = vmatprep.subr.mxu0 0.0
  %v1051 = vand.u32 %v669, 4294901760
  %1052 = vmatpush1.msra.mxu0 %v1051
  %1053 = vmatprep.subr.mxu0 0.0
  %v1054 = vand.u32 %v668, 4294901760
  %1055 = vmatpush1.msra.mxu0 %v1054
  %1056 = vmatprep.subr.mxu0 0.0
  %v1057 = vand.u32 %v667, 4294901760
  %1058 = vmatpush1.msra.mxu0 %v1057
  %1059 = vmatprep.subr.mxu0 0.0
  %1060 = vmatpush2.msra.mxu0 0.0
  %1061 = vmatprep.subr.mxu0 0.0
  %1062 = vmatpush2.msra.mxu0 0.0
  %1063 = vmatprep.subr.mxu0 0.0
  %1064 = vmatpush2.msra.mxu0 0.0
  %1065 = vmatprep.subr.mxu0 0.0
  %1066 = vmatpush2.msra.mxu0 0.0
  %1067 = vmatprep.subr.mxu0 0.0
  %1068 = vmatpush2.msra.mxu0 0.0
  %1069 = vmatprep.subr.mxu0 0.0
  %1070 = vmatpush2.msra.mxu0 0.0
  %1071 = vmatprep.subr.mxu0 0.0
  %1072 = vmatpush2.msra.mxu0 0.0
  %1073 = vmatprep.subr.mxu0 0.0
  %1074 = vmatpush2.msra.mxu0 0.0
  %1075 = vmatprep.subr.mxu0 0.0
  %1076 = vmatpush2.msra.mxu0 0.0
  %1077 = vmatprep.subr.mxu0 0.0
  %1078 = vmatpush2.msra.mxu0 0.0
  %1079 = vmatprep.subr.mxu0 0.0
  %1080 = vmatpush2.msra.mxu0 0.0
  %1081 = vmatprep.subr.mxu0 0.0
  %1082 = vmatpush2.msra.mxu0 0.0
  %1083 = vmatprep.subr.mxu0 0.0
  %1084 = vmatpush2.msra.mxu0 0.0
  %1085 = vmatprep.subr.mxu0 0.0
  %1086 = vmatpush2.msra.mxu0 0.0
  %1087 = vmatprep.subr.mxu0 0.0
  %1088 = vmatpush2.msra.mxu0 0.0
  %1089 = vmatprep.subr.mxu0 0.0
  %1090 = vmatpush2.msra.mxu0 0.0
  %1091 = vmatprep.mubr.f32.mxu0 0.0
  %v1092 = vand.u32 %v693, 4294901760
  %v1093 = vsub.f32 %v693, %v1092
  %v1094 = vand.u32 %v1093, 4294901760
  %1095 = vmatmul.mubr.f32.gmra.mxu0 %v1094
  %v1096 = vpop.f32.mrf.mxu0
  %v1097 = vadd.f32 %v999, %v1096
  %v1098 = vpop.f32.mrf.mxu0
  %1099 = vmatprep.mubr.f32.mxu0 0.0
  %v1100 = vand.u32 %v696, 4294901760
  %v1101 = vsub.f32 %v696, %v1100
  %v1102 = vand.u32 %v1101, 4294901760
  %1103 = vmatmul.mubr.f32.gmra.mxu0 %v1102
  %v1104 = vpop.f32.mrf.mxu0
  %v1105 = vadd.f32 %v1006, %v1104
  %v1106 = vpop.f32.mrf.mxu0
  %1107 = vmatprep.mubr.f32.mxu0 0.0
  %v1108 = vand.u32 %v699, 4294901760
  %v1109 = vsub.f32 %v699, %v1108
  %v1110 = vand.u32 %v1109, 4294901760
  %1111 = vmatmul.mubr.f32.gmra.mxu0 %v1110
  %v1112 = vpop.f32.mrf.mxu0
  %v1113 = vadd.f32 %v1013, %v1112
  %v1114 = vpop.f32.mrf.mxu0
  %1115 = vmatprep.mubr.f32.mxu0 0.0
  %v1116 = vand.u32 %v702, 4294901760
  %v1117 = vsub.f32 %v702, %v1116
  %v1118 = vand.u32 %v1117, 4294901760
  %1119 = vmatmul.mubr.f32.gmra.mxu0 %v1118
  %v1120 = vpop.f32.mrf.mxu0
  %v1121 = vadd.f32 %v1020, %v1120
  %v1122 = vpop.f32.mrf.mxu0
  %1123 = vdwg.mxu0
  %1124 = vmatprep.subr.mxu0 0.0
  %1125 = vmatpush1.msra.mxu0 0.0
  %1126 = vmatprep.subr.mxu0 0.0
  %1127 = vmatpush1.msra.mxu0 0.0
  %1128 = vmatprep.subr.mxu0 0.0
  %1129 = vmatpush1.msra.mxu0 0.0
  %1130 = vmatprep.subr.mxu0 0.0
  %1131 = vmatpush1.msra.mxu0 0.0
  %1132 = vmatprep.subr.mxu0 0.0
  %1133 = vmatpush1.msra.mxu0 0.0
  %1134 = vmatprep.subr.mxu0 0.0
  %1135 = vmatpush1.msra.mxu0 0.0
  %1136 = vmatprep.subr.mxu0 0.0
  %1137 = vmatpush1.msra.mxu0 0.0
  %1138 = vmatprep.subr.mxu0 0.0
  %1139 = vmatpush1.msra.mxu0 0.0
  %1140 = vmatprep.subr.mxu0 0.0
  %1141 = vmatpush1.msra.mxu0 0.0
  %1142 = vmatprep.subr.mxu0 0.0
  %1143 = vmatpush1.msra.mxu0 0.0
  %1144 = vmatprep.subr.mxu0 0.0
  %1145 = vmatpush1.msra.mxu0 0.0
  %1146 = vmatprep.subr.mxu0 0.0
  %1147 = vmatpush1.msra.mxu0 0.0
  %1148 = vmatprep.subr.mxu0 0.0
  %v1149 = vand.u32 %v670, 4294901760
  %v1150 = vsub.f32 %v670, %v1149
  %v1151 = vand.u32 %v1150, 4294901760
  %1152 = vmatpush1.msra.mxu0 %v1151
  %1153 = vmatprep.subr.mxu0 0.0
  %v1154 = vand.u32 %v669, 4294901760
  %v1155 = vsub.f32 %v669, %v1154
  %v1156 = vand.u32 %v1155, 4294901760
  %1157 = vmatpush1.msra.mxu0 %v1156
  %1158 = vmatprep.subr.mxu0 0.0
  %v1159 = vand.u32 %v668, 4294901760
  %v1160 = vsub.f32 %v668, %v1159
  %v1161 = vand.u32 %v1160, 4294901760
  %1162 = vmatpush1.msra.mxu0 %v1161
  %1163 = vmatprep.subr.mxu0 0.0
  %v1164 = vand.u32 %v667, 4294901760
  %v1165 = vsub.f32 %v667, %v1164
  %v1166 = vand.u32 %v1165, 4294901760
  %1167 = vmatpush1.msra.mxu0 %v1166
  %1168 = vmatprep.subr.mxu0 0.0
  %1169 = vmatpush2.msra.mxu0 0.0
  %1170 = vmatprep.subr.mxu0 0.0
  %1171 = vmatpush2.msra.mxu0 0.0
  %1172 = vmatprep.subr.mxu0 0.0
  %1173 = vmatpush2.msra.mxu0 0.0
  %1174 = vmatprep.subr.mxu0 0.0
  %1175 = vmatpush2.msra.mxu0 0.0
  %1176 = vmatprep.subr.mxu0 0.0
  %1177 = vmatpush2.msra.mxu0 0.0
  %1178 = vmatprep.subr.mxu0 0.0
  %1179 = vmatpush2.msra.mxu0 0.0
  %1180 = vmatprep.subr.mxu0 0.0
  %1181 = vmatpush2.msra.mxu0 0.0
  %1182 = vmatprep.subr.mxu0 0.0
  %1183 = vmatpush2.msra.mxu0 0.0
  %1184 = vmatprep.subr.mxu0 0.0
  %1185 = vmatpush2.msra.mxu0 0.0
  %1186 = vmatprep.subr.mxu0 0.0
  %1187 = vmatpush2.msra.mxu0 0.0
  %1188 = vmatprep.subr.mxu0 0.0
  %1189 = vmatpush2.msra.mxu0 0.0
  %1190 = vmatprep.subr.mxu0 0.0
  %1191 = vmatpush2.msra.mxu0 0.0
  %1192 = vmatprep.subr.mxu0 0.0
  %1193 = vmatpush2.msra.mxu0 0.0
  %1194 = vmatprep.subr.mxu0 0.0
  %1195 = vmatpush2.msra.mxu0 0.0
  %1196 = vmatprep.subr.mxu0 0.0
  %1197 = vmatpush2.msra.mxu0 0.0
  %1198 = vmatprep.subr.mxu0 0.0
  %1199 = vmatpush2.msra.mxu0 0.0
  %1200 = vmatprep.mubr.f32.mxu0 0.0
  %v1201 = vand.u32 %v693, 4294901760
  %1202 = vmatmul.mubr.f32.gmra.mxu0 %v1201
  %v1203 = vpop.f32.mrf.mxu0
  %v1204 = vadd.f32 %v1097, %v1203
  %v1205 = vpop.f32.mrf.mxu0
  %1206 = vmatprep.mubr.f32.mxu0 0.0
  %v1207 = vand.u32 %v696, 4294901760
  %1208 = vmatmul.mubr.f32.gmra.mxu0 %v1207
  %v1209 = vpop.f32.mrf.mxu0
  %v1210 = vadd.f32 %v1105, %v1209
  %v1211 = vpop.f32.mrf.mxu0
  %1212 = vmatprep.mubr.f32.mxu0 0.0
  %v1213 = vand.u32 %v699, 4294901760
  %1214 = vmatmul.mubr.f32.gmra.mxu0 %v1213
  %v1215 = vpop.f32.mrf.mxu0
  %v1216 = vadd.f32 %v1113, %v1215
  %v1217 = vpop.f32.mrf.mxu0
  %1218 = vmatprep.mubr.f32.mxu0 0.0
  %v1219 = vand.u32 %v702, 4294901760
  %1220 = vmatmul.mubr.f32.gmra.mxu0 %v1219
  %v1221 = vpop.f32.mrf.mxu0
  %v1222 = vadd.f32 %v1121, %v1221
  %v1223 = vpop.f32.mrf.mxu0
  %1224 = vdwg.mxu0
  %1225 = vmatprep.subr.mxu0 0.0
  %1226 = vmatpush1.msra.mxu0 0.0
  %1227 = vmatprep.subr.mxu0 0.0
  %1228 = vmatpush1.msra.mxu0 0.0
  %1229 = vmatprep.subr.mxu0 0.0
  %1230 = vmatpush1.msra.mxu0 0.0
  %1231 = vmatprep.subr.mxu0 0.0
  %1232 = vmatpush1.msra.mxu0 0.0
  %1233 = vmatprep.subr.mxu0 0.0
  %1234 = vmatpush1.msra.mxu0 0.0
  %1235 = vmatprep.subr.mxu0 0.0
  %1236 = vmatpush1.msra.mxu0 0.0
  %1237 = vmatprep.subr.mxu0 0.0
  %1238 = vmatpush1.msra.mxu0 0.0
  %1239 = vmatprep.subr.mxu0 0.0
  %1240 = vmatpush1.msra.mxu0 0.0
  %1241 = vmatprep.subr.mxu0 0.0
  %1242 = vmatpush1.msra.mxu0 0.0
  %1243 = vmatprep.subr.mxu0 0.0
  %1244 = vmatpush1.msra.mxu0 0.0
  %1245 = vmatprep.subr.mxu0 0.0
  %1246 = vmatpush1.msra.mxu0 0.0
  %1247 = vmatprep.subr.mxu0 0.0
  %1248 = vmatpush1.msra.mxu0 0.0
  %1249 = vmatprep.subr.mxu0 0.0
  %v1250 = vand.u32 %v670, 4294901760
  %1251 = vmatpush1.msra.mxu0 %v1250
  %1252 = vmatprep.subr.mxu0 0.0
  %v1253 = vand.u32 %v669, 4294901760
  %1254 = vmatpush1.msra.mxu0 %v1253
  %1255 = vmatprep.subr.mxu0 0.0
  %v1256 = vand.u32 %v668, 4294901760
  %1257 = vmatpush1.msra.mxu0 %v1256
  %1258 = vmatprep.subr.mxu0 0.0
  %v1259 = vand.u32 %v667, 4294901760
  %1260 = vmatpush1.msra.mxu0 %v1259
  %1261 = vmatprep.subr.mxu0 0.0
  %1262 = vmatpush2.msra.mxu0 0.0
  %1263 = vmatprep.subr.mxu0 0.0
  %1264 = vmatpush2.msra.mxu0 0.0
  %1265 = vmatprep.subr.mxu0 0.0
  %1266 = vmatpush2.msra.mxu0 0.0
  %1267 = vmatprep.subr.mxu0 0.0
  %1268 = vmatpush2.msra.mxu0 0.0
  %1269 = vmatprep.subr.mxu0 0.0
  %1270 = vmatpush2.msra.mxu0 0.0
  %1271 = vmatprep.subr.mxu0 0.0
  %1272 = vmatpush2.msra.mxu0 0.0
  %1273 = vmatprep.subr.mxu0 0.0
  %1274 = vmatpush2.msra.mxu0 0.0
  %1275 = vmatprep.subr.mxu0 0.0
  %1276 = vmatpush2.msra.mxu0 0.0
  %1277 = vmatprep.subr.mxu0 0.0
  %1278 = vmatpush2.msra.mxu0 0.0
  %1279 = vmatprep.subr.mxu0 0.0
  %1280 = vmatpush2.msra.mxu0 0.0
  %1281 = vmatprep.subr.mxu0 0.0
  %1282 = vmatpush2.msra.mxu0 0.0
  %1283 = vmatprep.subr.mxu0 0.0
  %1284 = vmatpush2.msra.mxu0 0.0
  %1285 = vmatprep.subr.mxu0 0.0
  %1286 = vmatpush2.msra.mxu0 0.0
  %1287 = vmatprep.subr.mxu0 0.0
  %1288 = vmatpush2.msra.mxu0 0.0
  %1289 = vmatprep.subr.mxu0 0.0
  %1290 = vmatpush2.msra.mxu0 0.0
  %1291 = vmatprep.subr.mxu0 0.0
  %1292 = vmatpush2.msra.mxu0 0.0
  %1293 = vmatprep.mubr.f32.mxu0 0.0
  %v1294 = vand.u32 %v693, 4294901760
  %1295 = vmatmul.mubr.f32.gmra.mxu0 %v1294
  %v1296 = vpop.f32.mrf.mxu0
  %v1297 = vadd.f32 %v1204, %v1296
  %v1298 = vpop.f32.mrf.mxu0
  %1299 = vmatprep.mubr.f32.mxu0 0.0
  %v1300 = vand.u32 %v696, 4294901760
  %1301 = vmatmul.mubr.f32.gmra.mxu0 %v1300
  %v1302 = vpop.f32.mrf.mxu0
  %v1303 = vadd.f32 %v1210, %v1302
  %v1304 = vpop.f32.mrf.mxu0
  %1305 = vmatprep.mubr.f32.mxu0 0.0
  %v1306 = vand.u32 %v699, 4294901760
  %1307 = vmatmul.mubr.f32.gmra.mxu0 %v1306
  %v1308 = vpop.f32.mrf.mxu0
  %v1309 = vadd.f32 %v1216, %v1308
  %v1310 = vpop.f32.mrf.mxu0
  %1311 = vmatprep.mubr.f32.mxu0 0.0
  %v1312 = vand.u32 %v702, 4294901760
  %1313 = vmatmul.mubr.f32.gmra.mxu0 %v1312
  %v1314 = vpop.f32.mrf.mxu0
  %v1315 = vadd.f32 %v1222, %v1314
  %v1316 = vpop.f32.mrf.mxu0
  %1317 = vdwg.mxu0
  %v1318 = vmax.f32 %v1297, 0.0
  %v1319 = vmax.f32 %v1303, 0.0
  %v1320 = vmax.f32 %v1309, 0.0
  %v1321 = vmax.f32 %v1315, 0.0
  %1323 = vset.pattern.permute.xlu0 0
  %1324 = vperm.xlu0 %1323, %v45
  %v1325 = vpop.permute.xlu0 %1324
  %v1328 = vsel %vm691, %v44, 0
  %1330 = vmatprep.subr.mxu0 0.0
  %1331 = vmatpush1.msra.mxu0 0.0
  %1332 = vmatprep.subr.mxu0 0.0
  %1333 = vmatpush1.msra.mxu0 0.0
  %1334 = vmatprep.subr.mxu0 0.0
  %1335 = vmatpush1.msra.mxu0 0.0
  %1336 = vmatprep.subr.mxu0 0.0
  %1337 = vmatpush1.msra.mxu0 0.0
  %1338 = vmatprep.subr.mxu0 0.0
  %1339 = vmatpush1.msra.mxu0 0.0
  %1340 = vmatprep.subr.mxu0 0.0
  %1341 = vmatpush1.msra.mxu0 0.0
  %1342 = vmatprep.subr.mxu0 0.0
  %1343 = vmatpush1.msra.mxu0 0.0
  %1344 = vmatprep.subr.mxu0 0.0
  %1345 = vmatpush1.msra.mxu0 0.0
  %1346 = vmatprep.subr.mxu0 0.0
  %1347 = vmatpush1.msra.mxu0 0.0
  %1348 = vmatprep.subr.mxu0 0.0
  %1349 = vmatpush1.msra.mxu0 0.0
  %1350 = vmatprep.subr.mxu0 0.0
  %1351 = vmatpush1.msra.mxu0 0.0
  %1352 = vmatprep.subr.mxu0 0.0
  %1353 = vmatpush1.msra.mxu0 0.0
  %1354 = vmatprep.subr.mxu0 0.0
  %v1355 = vand.u32 %v1321, 4294901760
  %1356 = vmatpush1.msra.mxu0 %v1355
  %1357 = vmatprep.subr.mxu0 0.0
  %v1358 = vand.u32 %v1320, 4294901760
  %1359 = vmatpush1.msra.mxu0 %v1358
  %1360 = vmatprep.subr.mxu0 0.0
  %v1361 = vand.u32 %v1319, 4294901760
  %1362 = vmatpush1.msra.mxu0 %v1361
  %1363 = vmatprep.subr.mxu0 0.0
  %v1364 = vand.u32 %v1318, 4294901760
  %1365 = vmatpush1.msra.mxu0 %v1364
  %1366 = vmatprep.subr.mxu0 0.0
  %1367 = vmatpush2.msra.mxu0 0.0
  %1368 = vmatprep.subr.mxu0 0.0
  %1369 = vmatpush2.msra.mxu0 0.0
  %1370 = vmatprep.subr.mxu0 0.0
  %1371 = vmatpush2.msra.mxu0 0.0
  %1372 = vmatprep.subr.mxu0 0.0
  %1373 = vmatpush2.msra.mxu0 0.0
  %1374 = vmatprep.subr.mxu0 0.0
  %1375 = vmatpush2.msra.mxu0 0.0
  %1376 = vmatprep.subr.mxu0 0.0
  %1377 = vmatpush2.msra.mxu0 0.0
  %1378 = vmatprep.subr.mxu0 0.0
  %1379 = vmatpush2.msra.mxu0 0.0
  %1380 = vmatprep.subr.mxu0 0.0
  %1381 = vmatpush2.msra.mxu0 0.0
  %1382 = vmatprep.subr.mxu0 0.0
  %1383 = vmatpush2.msra.mxu0 0.0
  %1384 = vmatprep.subr.mxu0 0.0
  %1385 = vmatpush2.msra.mxu0 0.0
  %1386 = vmatprep.subr.mxu0 0.0
  %1387 = vmatpush2.msra.mxu0 0.0
  %1388 = vmatprep.subr.mxu0 0.0
  %1389 = vmatpush2.msra.mxu0 0.0
  %1390 = vmatprep.subr.mxu0 0.0
  %1391 = vmatpush2.msra.mxu0 0.0
  %1392 = vmatprep.subr.mxu0 0.0
  %1393 = vmatpush2.msra.mxu0 0.0
  %1394 = vmatprep.subr.mxu0 0.0
  %1395 = vmatpush2.msra.mxu0 0.0
  %1396 = vmatprep.subr.mxu0 0.0
  %1397 = vmatpush2.msra.mxu0 0.0
  %1398 = vmatprep.mubr.f32.mxu0 0.0
  %v1399 = vand.u32 %v1328, 4294901760
  %v1400 = vsub.f32 %v1328, %v1399
  %v1401 = vand.u32 %v1400, 4294901760
  %v1402 = vsub.f32 %v1400, %v1401
  %v1403 = vand.u32 %v1402, 4294901760
  %1404 = vmatmul.mubr.f32.gmra.mxu0 %v1403
  %v1405 = vpop.f32.mrf.mxu0
  %v1406 = vadd.f32 %v1325, %v1405
  %v1407 = vpop.f32.mrf.mxu0
  %1408 = vdwg.mxu0
  %1409 = vmatprep.subr.mxu0 0.0
  %1410 = vmatpush1.msra.mxu0 0.0
  %1411 = vmatprep.subr.mxu0 0.0
  %1412 = vmatpush1.msra.mxu0 0.0
  %1413 = vmatprep.subr.mxu0 0.0
  %1414 = vmatpush1.msra.mxu0 0.0
  %1415 = vmatprep.subr.mxu0 0.0
  %1416 = vmatpush1.msra.mxu0 0.0
  %1417 = vmatprep.subr.mxu0 0.0
  %1418 = vmatpush1.msra.mxu0 0.0
  %1419 = vmatprep.subr.mxu0 0.0
  %1420 = vmatpush1.msra.mxu0 0.0
  %1421 = vmatprep.subr.mxu0 0.0
  %1422 = vmatpush1.msra.mxu0 0.0
  %1423 = vmatprep.subr.mxu0 0.0
  %1424 = vmatpush1.msra.mxu0 0.0
  %1425 = vmatprep.subr.mxu0 0.0
  %1426 = vmatpush1.msra.mxu0 0.0
  %1427 = vmatprep.subr.mxu0 0.0
  %1428 = vmatpush1.msra.mxu0 0.0
  %1429 = vmatprep.subr.mxu0 0.0
  %1430 = vmatpush1.msra.mxu0 0.0
  %1431 = vmatprep.subr.mxu0 0.0
  %1432 = vmatpush1.msra.mxu0 0.0
  %1433 = vmatprep.subr.mxu0 0.0
  %v1434 = vand.u32 %v1321, 4294901760
  %v1435 = vsub.f32 %v1321, %v1434
  %v1436 = vand.u32 %v1435, 4294901760
  %v1437 = vsub.f32 %v1435, %v1436
  %v1438 = vand.u32 %v1437, 4294901760
  %1439 = vmatpush1.msra.mxu0 %v1438
  %1440 = vmatprep.subr.mxu0 0.0
  %v1441 = vand.u32 %v1320, 4294901760
  %v1442 = vsub.f32 %v1320, %v1441
  %v1443 = vand.u32 %v1442, 4294901760
  %v1444 = vsub.f32 %v1442, %v1443
  %v1445 = vand.u32 %v1444, 4294901760
  %1446 = vmatpush1.msra.mxu0 %v1445
  %1447 = vmatprep.subr.mxu0 0.0
  %v1448 = vand.u32 %v1319, 4294901760
  %v1449 = vsub.f32 %v1319, %v1448
  %v1450 = vand.u32 %v1449, 4294901760
  %v1451 = vsub.f32 %v1449, %v1450
  %v1452 = vand.u32 %v1451, 4294901760
  %1453 = vmatpush1.msra.mxu0 %v1452
  %1454 = vmatprep.subr.mxu0 0.0
  %v1455 = vand.u32 %v1318, 4294901760
  %v1456 = vsub.f32 %v1318, %v1455
  %v1457 = vand.u32 %v1456, 4294901760
  %v1458 = vsub.f32 %v1456, %v1457
  %v1459 = vand.u32 %v1458, 4294901760
  %1460 = vmatpush1.msra.mxu0 %v1459
  %1461 = vmatprep.subr.mxu0 0.0
  %1462 = vmatpush2.msra.mxu0 0.0
  %1463 = vmatprep.subr.mxu0 0.0
  %1464 = vmatpush2.msra.mxu0 0.0
  %1465 = vmatprep.subr.mxu0 0.0
  %1466 = vmatpush2.msra.mxu0 0.0
  %1467 = vmatprep.subr.mxu0 0.0
  %1468 = vmatpush2.msra.mxu0 0.0
  %1469 = vmatprep.subr.mxu0 0.0
  %1470 = vmatpush2.msra.mxu0 0.0
  %1471 = vmatprep.subr.mxu0 0.0
  %1472 = vmatpush2.msra.mxu0 0.0
  %1473 = vmatprep.subr.mxu0 0.0
  %1474 = vmatpush2.msra.mxu0 0.0
  %1475 = vmatprep.subr.mxu0 0.0
  %1476 = vmatpush2.msra.mxu0 0.0
  %1477 = vmatprep.subr.mxu0 0.0
  %1478 = vmatpush2.msra.mxu0 0.0
  %1479 = vmatprep.subr.mxu0 0.0
  %1480 = vmatpush2.msra.mxu0 0.0
  %1481 = vmatprep.subr.mxu0 0.0
  %1482 = vmatpush2.msra.mxu0 0.0
  %1483 = vmatprep.subr.mxu0 0.0
  %1484 = vmatpush2.msra.mxu0 0.0
  %1485 = vmatprep.subr.mxu0 0.0
  %1486 = vmatpush2.msra.mxu0 0.0
  %1487 = vmatprep.subr.mxu0 0.0
  %1488 = vmatpush2.msra.mxu0 0.0
  %1489 = vmatprep.subr.mxu0 0.0
  %1490 = vmatpush2.msra.mxu0 0.0
  %1491 = vmatprep.subr.mxu0 0.0
  %1492 = vmatpush2.msra.mxu0 0.0
  %1493 = vmatprep.mubr.f32.mxu0 0.0
  %v1494 = vand.u32 %v1328, 4294901760
  %1495 = vmatmul.mubr.f32.gmra.mxu0 %v1494
  %v1496 = vpop.f32.mrf.mxu0
  %v1497 = vadd.f32 %v1406, %v1496
  %v1498 = vpop.f32.mrf.mxu0
  %1499 = vdwg.mxu0
  %1500 = vmatprep.subr.mxu0 0.0
  %1501 = vmatpush1.msra.mxu0 0.0
  %1502 = vmatprep.subr.mxu0 0.0
  %1503 = vmatpush1.msra.mxu0 0.0
  %1504 = vmatprep.subr.mxu0 0.0
  %1505 = vmatpush1.msra.mxu0 0.0
  %1506 = vmatprep.subr.mxu0 0.0
  %1507 = vmatpush1.msra.mxu0 0.0
  %1508 = vmatprep.subr.mxu0 0.0
  %1509 = vmatpush1.msra.mxu0 0.0
  %1510 = vmatprep.subr.mxu0 0.0
  %1511 = vmatpush1.msra.mxu0 0.0
  %1512 = vmatprep.subr.mxu0 0.0
  %1513 = vmatpush1.msra.mxu0 0.0
  %1514 = vmatprep.subr.mxu0 0.0
  %1515 = vmatpush1.msra.mxu0 0.0
  %1516 = vmatprep.subr.mxu0 0.0
  %1517 = vmatpush1.msra.mxu0 0.0
  %1518 = vmatprep.subr.mxu0 0.0
  %1519 = vmatpush1.msra.mxu0 0.0
  %1520 = vmatprep.subr.mxu0 0.0
  %1521 = vmatpush1.msra.mxu0 0.0
  %1522 = vmatprep.subr.mxu0 0.0
  %1523 = vmatpush1.msra.mxu0 0.0
  %1524 = vmatprep.subr.mxu0 0.0
  %v1525 = vand.u32 %v1321, 4294901760
  %v1526 = vsub.f32 %v1321, %v1525
  %1527 = vmatpush1.msra.mxu0 %v1526
  %1528 = vmatprep.subr.mxu0 0.0
  %v1529 = vand.u32 %v1320, 4294901760
  %v1530 = vsub.f32 %v1320, %v1529
  %1531 = vmatpush1.msra.mxu0 %v1530
  %1532 = vmatprep.subr.mxu0 0.0
  %v1533 = vand.u32 %v1319, 4294901760
  %v1534 = vsub.f32 %v1319, %v1533
  %1535 = vmatpush1.msra.mxu0 %v1534
  %1536 = vmatprep.subr.mxu0 0.0
  %v1537 = vand.u32 %v1318, 4294901760
  %v1538 = vsub.f32 %v1318, %v1537
  %1539 = vmatpush1.msra.mxu0 %v1538
  %1540 = vmatprep.subr.mxu0 0.0
  %1541 = vmatpush2.msra.mxu0 0.0
  %1542 = vmatprep.subr.mxu0 0.0
  %1543 = vmatpush2.msra.mxu0 0.0
  %1544 = vmatprep.subr.mxu0 0.0
  %1545 = vmatpush2.msra.mxu0 0.0
  %1546 = vmatprep.subr.mxu0 0.0
  %1547 = vmatpush2.msra.mxu0 0.0
  %1548 = vmatprep.subr.mxu0 0.0
  %1549 = vmatpush2.msra.mxu0 0.0
  %1550 = vmatprep.subr.mxu0 0.0
  %1551 = vmatpush2.msra.mxu0 0.0
  %1552 = vmatprep.subr.mxu0 0.0
  %1553 = vmatpush2.msra.mxu0 0.0
  %1554 = vmatprep.subr.mxu0 0.0
  %1555 = vmatpush2.msra.mxu0 0.0
  %1556 = vmatprep.subr.mxu0 0.0
  %1557 = vmatpush2.msra.mxu0 0.0
  %1558 = vmatprep.subr.mxu0 0.0
  %1559 = vmatpush2.msra.mxu0 0.0
  %1560 = vmatprep.subr.mxu0 0.0
  %1561 = vmatpush2.msra.mxu0 0.0
  %1562 = vmatprep.subr.mxu0 0.0
  %1563 = vmatpush2.msra.mxu0 0.0
  %1564 = vmatprep.subr.mxu0 0.0
  %1565 = vmatpush2.msra.mxu0 0.0
  %1566 = vmatprep.subr.mxu0 0.0
  %1567 = vmatpush2.msra.mxu0 0.0
  %1568 = vmatprep.subr.mxu0 0.0
  %1569 = vmatpush2.msra.mxu0 0.0
  %1570 = vmatprep.subr.mxu0 0.0
  %1571 = vmatpush2.msra.mxu0 0.0
  %1572 = vmatprep.mubr.f32.mxu0 0.0
  %v1573 = vand.u32 %v1328, 4294901760
  %v1574 = vsub.f32 %v1328, %v1573
  %1575 = vmatmul.mubr.f32.gmra.mxu0 %v1574
  %v1576 = vpop.f32.mrf.mxu0
  %v1577 = vadd.f32 %v1497, %v1576
  %v1578 = vpop.f32.mrf.mxu0
  %1579 = vdwg.mxu0
  %1580 = vmatprep.subr.mxu0 0.0
  %1581 = vmatpush1.msra.mxu0 0.0
  %1582 = vmatprep.subr.mxu0 0.0
  %1583 = vmatpush1.msra.mxu0 0.0
  %1584 = vmatprep.subr.mxu0 0.0
  %1585 = vmatpush1.msra.mxu0 0.0
  %1586 = vmatprep.subr.mxu0 0.0
  %1587 = vmatpush1.msra.mxu0 0.0
  %1588 = vmatprep.subr.mxu0 0.0
  %1589 = vmatpush1.msra.mxu0 0.0
  %1590 = vmatprep.subr.mxu0 0.0
  %1591 = vmatpush1.msra.mxu0 0.0
  %1592 = vmatprep.subr.mxu0 0.0
  %1593 = vmatpush1.msra.mxu0 0.0
  %1594 = vmatprep.subr.mxu0 0.0
  %1595 = vmatpush1.msra.mxu0 0.0
  %1596 = vmatprep.subr.mxu0 0.0
  %1597 = vmatpush1.msra.mxu0 0.0
  %1598 = vmatprep.subr.mxu0 0.0
  %1599 = vmatpush1.msra.mxu0 0.0
  %1600 = vmatprep.subr.mxu0 0.0
  %1601 = vmatpush1.msra.mxu0 0.0
  %1602 = vmatprep.subr.mxu0 0.0
  %1603 = vmatpush1.msra.mxu0 0.0
  %1604 = vmatprep.subr.mxu0 0.0
  %v1605 = vand.u32 %v1321, 4294901760
  %1606 = vmatpush1.msra.mxu0 %v1605
  %1607 = vmatprep.subr.mxu0 0.0
  %v1608 = vand.u32 %v1320, 4294901760
  %1609 = vmatpush1.msra.mxu0 %v1608
  %1610 = vmatprep.subr.mxu0 0.0
  %v1611 = vand.u32 %v1319, 4294901760
  %1612 = vmatpush1.msra.mxu0 %v1611
  %1613 = vmatprep.subr.mxu0 0.0
  %v1614 = vand.u32 %v1318, 4294901760
  %1615 = vmatpush1.msra.mxu0 %v1614
  %1616 = vmatprep.subr.mxu0 0.0
  %1617 = vmatpush2.msra.mxu0 0.0
  %1618 = vmatprep.subr.mxu0 0.0
  %1619 = vmatpush2.msra.mxu0 0.0
  %1620 = vmatprep.subr.mxu0 0.0
  %1621 = vmatpush2.msra.mxu0 0.0
  %1622 = vmatprep.subr.mxu0 0.0
  %1623 = vmatpush2.msra.mxu0 0.0
  %1624 = vmatprep.subr.mxu0 0.0
  %1625 = vmatpush2.msra.mxu0 0.0
  %1626 = vmatprep.subr.mxu0 0.0
  %1627 = vmatpush2.msra.mxu0 0.0
  %1628 = vmatprep.subr.mxu0 0.0
  %1629 = vmatpush2.msra.mxu0 0.0
  %1630 = vmatprep.subr.mxu0 0.0
  %1631 = vmatpush2.msra.mxu0 0.0
  %1632 = vmatprep.subr.mxu0 0.0
  %1633 = vmatpush2.msra.mxu0 0.0
  %1634 = vmatprep.subr.mxu0 0.0
  %1635 = vmatpush2.msra.mxu0 0.0
  %1636 = vmatprep.subr.mxu0 0.0
  %1637 = vmatpush2.msra.mxu0 0.0
  %1638 = vmatprep.subr.mxu0 0.0
  %1639 = vmatpush2.msra.mxu0 0.0
  %1640 = vmatprep.subr.mxu0 0.0
  %1641 = vmatpush2.msra.mxu0 0.0
  %1642 = vmatprep.subr.mxu0 0.0
  %1643 = vmatpush2.msra.mxu0 0.0
  %1644 = vmatprep.subr.mxu0 0.0
  %1645 = vmatpush2.msra.mxu0 0.0
  %1646 = vmatprep.subr.mxu0 0.0
  %1647 = vmatpush2.msra.mxu0 0.0
  %1648 = vmatprep.mubr.f32.mxu0 0.0
  %v1649 = vand.u32 %v1328, 4294901760
  %v1650 = vsub.f32 %v1328, %v1649
  %v1651 = vand.u32 %v1650, 4294901760
  %1652 = vmatmul.mubr.f32.gmra.mxu0 %v1651
  %v1653 = vpop.f32.mrf.mxu0
  %v1654 = vadd.f32 %v1577, %v1653
  %v1655 = vpop.f32.mrf.mxu0
  %1656 = vdwg.mxu0
  %1657 = vmatprep.subr.mxu0 0.0
  %1658 = vmatpush1.msra.mxu0 0.0
  %1659 = vmatprep.subr.mxu0 0.0
  %1660 = vmatpush1.msra.mxu0 0.0
  %1661 = vmatprep.subr.mxu0 0.0
  %1662 = vmatpush1.msra.mxu0 0.0
  %1663 = vmatprep.subr.mxu0 0.0
  %1664 = vmatpush1.msra.mxu0 0.0
  %1665 = vmatprep.subr.mxu0 0.0
  %1666 = vmatpush1.msra.mxu0 0.0
  %1667 = vmatprep.subr.mxu0 0.0
  %1668 = vmatpush1.msra.mxu0 0.0
  %1669 = vmatprep.subr.mxu0 0.0
  %1670 = vmatpush1.msra.mxu0 0.0
  %1671 = vmatprep.subr.mxu0 0.0
  %1672 = vmatpush1.msra.mxu0 0.0
  %1673 = vmatprep.subr.mxu0 0.0
  %1674 = vmatpush1.msra.mxu0 0.0
  %1675 = vmatprep.subr.mxu0 0.0
  %1676 = vmatpush1.msra.mxu0 0.0
  %1677 = vmatprep.subr.mxu0 0.0
  %1678 = vmatpush1.msra.mxu0 0.0
  %1679 = vmatprep.subr.mxu0 0.0
  %1680 = vmatpush1.msra.mxu0 0.0
  %1681 = vmatprep.subr.mxu0 0.0
  %v1682 = vand.u32 %v1321, 4294901760
  %v1683 = vsub.f32 %v1321, %v1682
  %v1684 = vand.u32 %v1683, 4294901760
  %1685 = vmatpush1.msra.mxu0 %v1684
  %1686 = vmatprep.subr.mxu0 0.0
  %v1687 = vand.u32 %v1320, 4294901760
  %v1688 = vsub.f32 %v1320, %v1687
  %v1689 = vand.u32 %v1688, 4294901760
  %1690 = vmatpush1.msra.mxu0 %v1689
  %1691 = vmatprep.subr.mxu0 0.0
  %v1692 = vand.u32 %v1319, 4294901760
  %v1693 = vsub.f32 %v1319, %v1692
  %v1694 = vand.u32 %v1693, 4294901760
  %1695 = vmatpush1.msra.mxu0 %v1694
  %1696 = vmatprep.subr.mxu0 0.0
  %v1697 = vand.u32 %v1318, 4294901760
  %v1698 = vsub.f32 %v1318, %v1697
  %v1699 = vand.u32 %v1698, 4294901760
  %1700 = vmatpush1.msra.mxu0 %v1699
  %1701 = vmatprep.subr.mxu0 0.0
  %1702 = vmatpush2.msra.mxu0 0.0
  %1703 = vmatprep.subr.mxu0 0.0
  %1704 = vmatpush2.msra.mxu0 0.0
  %1705 = vmatprep.subr.mxu0 0.0
  %1706 = vmatpush2.msra.mxu0 0.0
  %1707 = vmatprep.subr.mxu0 0.0
  %1708 = vmatpush2.msra.mxu0 0.0
  %1709 = vmatprep.subr.mxu0 0.0
  %1710 = vmatpush2.msra.mxu0 0.0
  %1711 = vmatprep.subr.mxu0 0.0
  %1712 = vmatpush2.msra.mxu0 0.0
  %1713 = vmatprep.subr.mxu0 0.0
  %1714 = vmatpush2.msra.mxu0 0.0
  %1715 = vmatprep.subr.mxu0 0.0
  %1716 = vmatpush2.msra.mxu0 0.0
  %1717 = vmatprep.subr.mxu0 0.0
  %1718 = vmatpush2.msra.mxu0 0.0
  %1719 = vmatprep.subr.mxu0 0.0
  %1720 = vmatpush2.msra.mxu0 0.0
  %1721 = vmatprep.subr.mxu0 0.0
  %1722 = vmatpush2.msra.mxu0 0.0
  %1723 = vmatprep.subr.mxu0 0.0
  %1724 = vmatpush2.msra.mxu0 0.0
  %1725 = vmatprep.subr.mxu0 0.0
  %1726 = vmatpush2.msra.mxu0 0.0
  %1727 = vmatprep.subr.mxu0 0.0
  %1728 = vmatpush2.msra.mxu0 0.0
  %1729 = vmatprep.subr.mxu0 0.0
  %1730 = vmatpush2.msra.mxu0 0.0
  %1731 = vmatprep.subr.mxu0 0.0
  %1732 = vmatpush2.msra.mxu0 0.0
  %1733 = vmatprep.mubr.f32.mxu0 0.0
  %v1734 = vand.u32 %v1328, 4294901760
  %1735 = vmatmul.mubr.f32.gmra.mxu0 %v1734
  %v1736 = vpop.f32.mrf.mxu0
  %v1737 = vadd.f32 %v1654, %v1736
  %v1738 = vpop.f32.mrf.mxu0
  %1739 = vdwg.mxu0
  %1740 = vmatprep.subr.mxu0 0.0
  %1741 = vmatpush1.msra.mxu0 0.0
  %1742 = vmatprep.subr.mxu0 0.0
  %1743 = vmatpush1.msra.mxu0 0.0
  %1744 = vmatprep.subr.mxu0 0.0
  %1745 = vmatpush1.msra.mxu0 0.0
  %1746 = vmatprep.subr.mxu0 0.0
  %1747 = vmatpush1.msra.mxu0 0.0
  %1748 = vmatprep.subr.mxu0 0.0
  %1749 = vmatpush1.msra.mxu0 0.0
  %1750 = vmatprep.subr.mxu0 0.0
  %1751 = vmatpush1.msra.mxu0 0.0
  %1752 = vmatprep.subr.mxu0 0.0
  %1753 = vmatpush1.msra.mxu0 0.0
  %1754 = vmatprep.subr.mxu0 0.0
  %1755 = vmatpush1.msra.mxu0 0.0
  %1756 = vmatprep.subr.mxu0 0.0
  %1757 = vmatpush1.msra.mxu0 0.0
  %1758 = vmatprep.subr.mxu0 0.0
  %1759 = vmatpush1.msra.mxu0 0.0
  %1760 = vmatprep.subr.mxu0 0.0
  %1761 = vmatpush1.msra.mxu0 0.0
  %1762 = vmatprep.subr.mxu0 0.0
  %1763 = vmatpush1.msra.mxu0 0.0
  %1764 = vmatprep.subr.mxu0 0.0
  %v1765 = vand.u32 %v1321, 4294901760
  %1766 = vmatpush1.msra.mxu0 %v1765
  %1767 = vmatprep.subr.mxu0 0.0
  %v1768 = vand.u32 %v1320, 4294901760
  %1769 = vmatpush1.msra.mxu0 %v1768
  %1770 = vmatprep.subr.mxu0 0.0
  %v1771 = vand.u32 %v1319, 4294901760
  %1772 = vmatpush1.msra.mxu0 %v1771
  %1773 = vmatprep.subr.mxu0 0.0
  %v1774 = vand.u32 %v1318, 4294901760
  %1775 = vmatpush1.msra.mxu0 %v1774
  %1776 = vmatprep.subr.mxu0 0.0
  %1777 = vmatpush2.msra.mxu0 0.0
  %1778 = vmatprep.subr.mxu0 0.0
  %1779 = vmatpush2.msra.mxu0 0.0
  %1780 = vmatprep.subr.mxu0 0.0
  %1781 = vmatpush2.msra.mxu0 0.0
  %1782 = vmatprep.subr.mxu0 0.0
  %1783 = vmatpush2.msra.mxu0 0.0
  %1784 = vmatprep.subr.mxu0 0.0
  %1785 = vmatpush2.msra.mxu0 0.0
  %1786 = vmatprep.subr.mxu0 0.0
  %1787 = vmatpush2.msra.mxu0 0.0
  %1788 = vmatprep.subr.mxu0 0.0
  %1789 = vmatpush2.msra.mxu0 0.0
  %1790 = vmatprep.subr.mxu0 0.0
  %1791 = vmatpush2.msra.mxu0 0.0
  %1792 = vmatprep.subr.mxu0 0.0
  %1793 = vmatpush2.msra.mxu0 0.0
  %1794 = vmatprep.subr.mxu0 0.0
  %1795 = vmatpush2.msra.mxu0 0.0
  %1796 = vmatprep.subr.mxu0 0.0
  %1797 = vmatpush2.msra.mxu0 0.0
  %1798 = vmatprep.subr.mxu0 0.0
  %1799 = vmatpush2.msra.mxu0 0.0
  %1800 = vmatprep.subr.mxu0 0.0
  %1801 = vmatpush2.msra.mxu0 0.0
  %1802 = vmatprep.subr.mxu0 0.0
  %1803 = vmatpush2.msra.mxu0 0.0
  %1804 = vmatprep.subr.mxu0 0.0
  %1805 = vmatpush2.msra.mxu0 0.0
  %1806 = vmatprep.subr.mxu0 0.0
  %1807 = vmatpush2.msra.mxu0 0.0
  %1808 = vmatprep.mubr.f32.mxu0 0.0
  %v1809 = vand.u32 %v1328, 4294901760
  %1810 = vmatmul.mubr.f32.gmra.mxu0 %v1809
  %v1811 = vpop.f32.mrf.mxu0
  %v1812 = vadd.f32 %v1737, %v1811
  %v1813 = vpop.f32.mrf.mxu0
  %1814 = vdwg.mxu0
  %vm1815 = vcmask 15360
  %v1816 = vsel %vm1815, %v1812, -inf
  %1817 = vmax.xlane.f32.xlu0 %v1816
  %v1818 = vpop.xlane.xlu0 %1817
  %v1819 = vsub.f32 %v1812, %v1818
  %v1820 = vmul.f32 %v1819, 1.442695
  %v1821 = vpow.pop %v1820
  %v1822 = vsel %vm1815, %v1821, 0.0
  %1823 = vadd.xlane.f32.xlu0 %v1822
  %v1824 = vpop.xlane.xlu0 %1823
  %v1825 = vrcp.pop %v1824
  %v1826 = vmul.f32 %v1821, %v1825
  %1827 = vst.msk [vmem:[%s7] sm:$0xff] %vm1815, %v1826
  // Predicated region
  $region30: #{policy_network_forward.1} parent=0 // pred_check
    _
  $region31: #{policy_network_forward.1} parent=0 // pred_check_branch
    %1829 = sbr.rel (0) target = $region33
  $region32: #{policy_network_forward.1} parent=0 // pred_region
    _
  $region33: #{policy_network_forward.1} parent=0 // pred_fallthru
    _
  // Predicated region
  $region34: #{policy_network_forward.1} parent=0 // pred_check
    _
  $region35: #{policy_network_forward.1} parent=0 // pred_check_branch
    %1831 = sbr.rel (0) target = $region37
  $region36: #{policy_network_forward.1} parent=0 // pred_region
    _
  $region37: #{policy_network_forward.1} parent=0 // pred_fallthru
    _

</llo_original>
